<compile_context>
chip_gen: v6e
topology: v6e:2x2x1
jax: 0.10.0
libtpu: 0.0.40
codegen_flags: <defaults>
</compile_context>

<pallas_src>
import functools

import jax
import jax.numpy as jnp
from jax import lax
from jax.experimental import pallas as pl
from jax.experimental.pallas import tpu as pltpu

FP8_MAX = 448.0            # float8_e4m3fn max
EPS = 1e-6
VMEM_LIMIT = 64 * 1024 * 1024


# ----------------------- RMSNorm + per-token FP8 quant -----------------------
def _rmsnorm_quant_kernel(x_ref, w_ref, qx_ref, scale_ref):
    x = x_ref[...].astype(jnp.float32)                        # (TM, H)
    var = jnp.mean(x * x, axis=-1, keepdims=True)
    xn = x * lax.rsqrt(var + EPS)
    xn = xn * w_ref[...].astype(jnp.float32)                  # (1, H) broadcast
    amax = jnp.maximum(jnp.max(jnp.abs(xn), axis=-1, keepdims=True), 1e-6)
    scale_ref[...] = (amax * (1.0 / FP8_MAX)).astype(jnp.bfloat16)
    q = jnp.clip(xn * (FP8_MAX / amax), -FP8_MAX, FP8_MAX)
    qx_ref[...] = q.astype(jnp.float8_e4m3fn)


def rmsnorm_quant(x, ln_w, tm=128):
    M, H = x.shape
    tm = min(tm, M)
    assert M % tm == 0
    return pl.pallas_call(
        _rmsnorm_quant_kernel,
        out_shape=(jax.ShapeDtypeStruct((M, H), jnp.float8_e4m3fn),
                   jax.ShapeDtypeStruct((M, 1), jnp.bfloat16)),
        grid=(M // tm,),
        in_specs=[pl.BlockSpec((tm, H), lambda i: (i, 0)),
                  pl.BlockSpec((1, H), lambda i: (0, 0))],
        out_specs=(pl.BlockSpec((tm, H), lambda i: (i, 0)),
                   pl.BlockSpec((tm, 1), lambda i: (i, 0))),
        compiler_params=pltpu.CompilerParams(dimension_semantics=("parallel",)),
    )(x, ln_w)


# ------------------ int4-weight / fp8-activation linear kernel ---------------
# Weight stays packed in HBM: uint32 words of shape (K//8, N), group-planar
# nibble layout (see pack_int4_kn).  Unpack = 8 shift/mask ops + one sublane
# concat per 128-wide group; the per-group fp8 scale is applied to the (tm, tn)
# partial AFTER the MXU matmul (lane-dense, cheap).
def _qlinear_body(x_ref, wp_ref, ws_ref, xs_ref, res_ref, o_ref, acc_ref, *,
                  group_size, groups_per_step):
    kk = pl.program_id(2)

    @pl.when(kk == 0)
    def _():
        acc_ref[...] = jnp.zeros_like(acc_ref)

    # single fp8 -> bf16 cast (fp8 values are exact in bf16)
    x = x_ref[...].astype(jnp.bfloat16)                        # (tm, tk)

    G = group_size
    gw = G // 8                                                # packed rows per group
    for g in range(groups_per_step):
        wp_g = wp_ref[g * gw:(g + 1) * gw, :]                  # (G//8, tn) uint32
        planes = [((wp_g >> (4 * j)) & 0xF).astype(jnp.int32) for j in range(8)]
        w_g = jnp.concatenate(planes, axis=0)                  # (G, tn), nibbles 0..15
        w_g = ((w_g ^ 8) - 8).astype(jnp.bfloat16)             # int4 sign-extend -> bf16
        partial = jnp.dot(x[:, g * G:(g + 1) * G], w_g,
                          preferred_element_type=jnp.float32)  # (tm, tn) on MXU
        acc_ref[...] += partial * ws_ref[g].astype(jnp.float32)  # (1, tn) group scale

    @pl.when(kk == pl.num_programs(2) - 1)
    def _():
        y = acc_ref[...] * xs_ref[...].astype(jnp.float32)     # per-token act scale
        if res_ref is not None:
            y = y + res_ref[...].astype(jnp.float32)
        o_ref[...] = y.astype(o_ref.dtype)


def _qlinear_kernel(x_ref, wp_ref, ws_ref, xs_ref, o_ref, acc_ref, **kw):
    _qlinear_body(x_ref, wp_ref, ws_ref, xs_ref, None, o_ref, acc_ref, **kw)


def _qlinear_res_kernel(x_ref, wp_ref, ws_ref, xs_ref, res_ref, o_ref, acc_ref, **kw):
    _qlinear_body(x_ref, wp_ref, ws_ref, xs_ref, res_ref, o_ref, acc_ref, **kw)


def qlinear_i4fp8(qx, qx_scale, wp, ws, group_size, residual=None,
                  out_dtype=jnp.bfloat16, tm=128, tn=256, max_groups_per_step=8):
    """y = (fp8(x) @ dequant(int4 W, fp8 group scales)) * per_token_scale [+ residual].

    wp: packed int4 weights, (K//8, N) uint32 (group-planar nibble layout).
    ws: per-group weight scales, (K//G, 1, N) float8_e4m3fn.
    """
    M, K = qx.shape
    Kp, N = wp.shape
    assert Kp * 8 == K and K % group_size == 0
    n_groups = K // group_size
    assert ws.shape == (n_groups, 1, N)

    tm = min(tm, M)
    assert M % tm == 0
    if N % tn != 0:
        tn = 128
    assert N % tn == 0
    gps = min(n_groups, max_groups_per_step)       # several groups per K step
    while n_groups % gps:
        gps -= 1
    tk = gps * group_size

    grid = (M // tm, N // tn, K // tk)
    in_specs = [
        pl.BlockSpec((tm, tk), lambda i, j, k: (i, k)),
        pl.BlockSpec((tk // 8, tn), lambda i, j, k: (k, j)),
        pl.BlockSpec((gps, 1, tn), lambda i, j, k: (k, 0, j)),
        pl.BlockSpec((tm, 1), lambda i, j, k: (i, 0)),
    ]
    args = [qx, wp, ws, qx_scale]
    kernel = functools.partial(_qlinear_kernel,
                               group_size=group_size, groups_per_step=gps)
    if residual is not None:
        in_specs.append(pl.BlockSpec((tm, tn), lambda i, j, k: (i, j)))
        args.append(residual)
        kernel = functools.partial(_qlinear_res_kernel,
                                   group_size=group_size, groups_per_step=gps)

    return pl.pallas_call(
        kernel,
        out_shape=jax.ShapeDtypeStruct((M, N), out_dtype),
        grid=grid,
        in_specs=in_specs,
        out_specs=pl.BlockSpec((tm, tn), lambda i, j, k: (i, j)),
        scratch_shapes=[pltpu.VMEM((tm, tn), jnp.float32)],
        compiler_params=pltpu.CompilerParams(
            dimension_semantics=("parallel", "parallel", "arbitrary"),
            vmem_limit_bytes=VMEM_LIMIT),
    )(*args)


# -------- flash causal GQA attention + fused RoPE + fp8 output quant ---------
# TODO(synk): FP8FP8FmhaFwd's internal fp8 re-quantization of q/k/v is not
# public; attention matmuls here use bf16 operands with f32 accumulation.
def _flash_attn_kernel(q_ref, k_ref, v_ref, cosq_ref, sinq_ref, cosk_ref, sink_ref,
                       o_ref, os_ref, m_ref, l_ref, acc_ref, *,
                       n_heads, n_kv, head_dim, tq, tkv, scaling):
    qi = pl.program_id(1)
    ki = pl.program_id(2)
    D = head_dim
    n_groups = n_heads // n_kv

    @pl.when(ki == 0)
    def _():
        m_ref[...] = jnp.full_like(m_ref, -1e30)
        l_ref[...] = jnp.zeros_like(l_ref)
        acc_ref[...] = jnp.zeros_like(acc_ref)

    # Skip kv tiles entirely in the causal future of this q tile.
    @pl.when(ki * tkv <= qi * tq + (tq - 1))
    def _():
        cos_q = cosq_ref[...]
        sin_q = sinq_ref[...]
        cos_k = cosk_ref[...]
        sin_k = sink_ref[...]

        # RoPE on kv heads (fused; the roll runs on the XLU slot).
        k_heads, v_heads = [], []
        for hk in range(n_kv):
            kh = k_ref[:, hk * D:(hk + 1) * D].astype(jnp.float32)
            kh = kh * cos_k + pltpu.roll(kh, D // 2, axis=1) * sin_k
            k_heads.append(kh.astype(jnp.bfloat16))
            v_heads.append(v_ref[:, hk * D:(hk + 1) * D])

        row = lax.broadcasted_iota(jnp.int32, (tq, tkv), 0) + qi * tq
        col = lax.broadcasted_iota(jnp.int32, (tq, tkv), 1) + ki * tkv
        causal = col <= row

        for h in range(n_heads):
            qh = q_ref[:, h * D:(h + 1) * D].astype(jnp.float32)
            qh = (qh * cos_q + pltpu.roll(qh, D // 2, axis=1) * sin_q
                  ).astype(jnp.bfloat16)
            kh = k_heads[h // n_groups]
            vh = v_heads[h // n_groups]

            s = lax.dot_general(qh, kh, (((1,), (1,)), ((), ())),
                                preferred_element_type=jnp.float32) * scaling
            s = jnp.where(causal, s, -1e30)

            m_prev = m_ref[:, h:h + 1]
            m_new = jnp.maximum(m_prev, jnp.max(s, axis=-1, keepdims=True))
            alpha = jnp.exp(m_prev - m_new)
            p = jnp.exp(s - m_new)
            l_ref[:, h:h + 1] = (alpha * l_ref[:, h:h + 1]
                                 + jnp.sum(p, axis=-1, keepdims=True))
            acc_ref[:, h * D:(h + 1) * D] = (
                alpha * acc_ref[:, h * D:(h + 1) * D]
                + jnp.dot(p.astype(jnp.bfloat16), vh,
                          preferred_element_type=jnp.float32))
            m_ref[:, h:h + 1] = m_new

    # Epilogue: normalize, concatenate heads (lane-dense), per-token fp8 quant.
    @pl.when(ki == pl.num_programs(2) - 1)
    def _():
        outs = []
        for h in range(n_heads):
            inv_l = pl.reciprocal(l_ref[:, h:h + 1], approx=True)
            outs.append(acc_ref[:, h * D:(h + 1) * D] * inv_l)
        o_full = jnp.concatenate(outs, axis=-1) if n_heads > 1 else outs[0]
        amax = jnp.maximum(jnp.max(jnp.abs(o_full), axis=-1, keepdims=True), 1e-6)
        os_ref[...] = (amax * (1.0 / FP8_MAX)).astype(jnp.bfloat16)
        q8 = jnp.clip(o_full * (FP8_MAX / amax), -FP8_MAX, FP8_MAX)
        o_ref[...] = q8.astype(jnp.float8_e4m3fn)


def flash_attention_quant(qkv, cos, sin_signed, *, batch, seq, n_heads, n_kv,
                          head_dim, scaling, tq=128, tkv=128):
    """Reads q/k/v straight from the fused qkv projection buffer [B*S, (NH+2*NKV)*D];
    returns (fp8 attention output [B*S, NH*D], per-token bf16 scale [B*S, 1])."""
    M, n_total = qkv.shape
    D = head_dim
    assert M == batch * seq and n_total == (n_heads + 2 * n_kv) * D
    tq = min(tq, seq)
    tkv = min(tkv, seq)
    assert seq % tq == 0 and seq % tkv == 0
    qb = seq // tq
    kb = seq // tkv
    n_groups = n_heads // n_kv

    kernel = functools.partial(
        _flash_attn_kernel, n_heads=n_heads, n_kv=n_kv, head_dim=D,
        tq=tq, tkv=tkv, scaling=scaling)

    return pl.pallas_call(
        kernel,
        out_shape=(jax.ShapeDtypeStruct((M, n_heads * D), jnp.float8_e4m3fn),
                   jax.ShapeDtypeStruct((M, 1), jnp.bfloat16)),
        grid=(batch, qb, kb),
        in_specs=[
            pl.BlockSpec((tq, n_heads * D), lambda b, i, j: (b * qb + i, 0)),
            pl.BlockSpec((tkv, n_kv * D), lambda b, i, j: (b * kb + j, n_groups)),
            pl.BlockSpec((tkv, n_kv * D), lambda b, i, j: (b * kb + j, n_groups + 1)),
            pl.BlockSpec((tq, D), lambda b, i, j: (i, 0)),      # cos (q rows)
            pl.BlockSpec((tq, D), lambda b, i, j: (i, 0)),      # signed sin (q rows)
            pl.BlockSpec((tkv, D), lambda b, i, j: (j, 0)),     # cos (kv rows)
            pl.BlockSpec((tkv, D), lambda b, i, j: (j, 0)),     # signed sin (kv rows)
        ],
        out_specs=(pl.BlockSpec((tq, n_heads * D), lambda b, i, j: (b * qb + i, 0)),
                   pl.BlockSpec((tq, 1), lambda b, i, j: (b * qb + i, 0))),
        scratch_shapes=[pltpu.VMEM((tq, n_heads), jnp.float32),        # running max
                        pltpu.VMEM((tq, n_heads), jnp.float32),        # running sum
                        pltpu.VMEM((tq, n_heads * D), jnp.float32)],   # accumulator
        compiler_params=pltpu.CompilerParams(
            dimension_semantics=("parallel", "parallel", "arbitrary"),
            vmem_limit_bytes=VMEM_LIMIT),
    )(qkv, qkv, qkv, cos, sin_signed, cos, sin_signed)


# ---------------------------- parameter preparation ---------------------------
def pack_int4_kn(w_i4, group_size):
    """Pack int4 values (int8 in [-8,7], shape (N, K)) into uint32 of shape (K//8, N).

    Group-planar nibble layout along K: within each 128-wide quant group g,
    packed word w holds, in nibble j, the value at K index g*G + j*(G//8) + w,
    so the kernel reconstructs the group with 8 shift/mask ops + a sublane concat.
    """
    N, K = w_i4.shape
    G = group_size
    assert K % G == 0 and G % 8 == 0
    wt = jnp.transpose(w_i4, (1, 0))                            # (K, N)
    nib = wt.astype(jnp.uint32) & jnp.uint32(0xF)               # two's-complement nibbles
    nib = nib.reshape(K // G, 8, G // 8, N)                     # [group, plane, word, n]
    shifts = (jnp.arange(8, dtype=jnp.uint32) * 4).reshape(1, 8, 1, 1)
    packed = jnp.sum(nib << shifts, axis=1, dtype=jnp.uint32)   # [group, word, n]
    return packed.reshape(K // 8, N)


def prep_group_scales(scale_f32):
    # (N, K//G) -> (K//G, 1, N) float8_e4m3fn, lane-dense along N for the kernel.
    return jnp.transpose(scale_f32, (1, 0))[:, None, :].astype(jnp.float8_e4m3fn)


def rope_cos_sin(seq_len, head_dim, theta=10000.0):
    inv_freq = 1.0 / (theta ** (jnp.arange(0, head_dim, 2, dtype=jnp.float32) / head_dim))
    pos = jnp.arange(seq_len, dtype=jnp.float32)
    freqs = pos[:, None] * inv_freq[None, :]
    emb = jnp.concatenate([freqs, freqs], axis=-1)
    return jnp.cos(emb), jnp.sin(emb)


def init_params(key, hidden, n_heads, n_kv, head_dim, group_size):
    keys = jax.random.split(key, 9)
    ln_w = (1.0 + 0.02 * jax.random.normal(keys[0], (hidden,), jnp.float32)
            ).astype(jnp.bfloat16)

    def make_int4(kw, ks, out_f, in_f):
        w = jax.random.randint(kw, (out_f, in_f), -8, 8, dtype=jnp.int8)
        s = jax.random.uniform(ks, (out_f, in_f // group_size), jnp.float32, 0.02, 0.1)
        return w, s

    wq, sq = make_int4(keys[1], keys[2], n_heads * head_dim, hidden)
    wk, sk = make_int4(keys[3], keys[4], n_kv * head_dim, hidden)
    wv, sv = make_int4(keys[5], keys[6], n_kv * head_dim, hidden)
    wo, so = make_int4(keys[7], keys[8], hidden, n_heads * head_dim)

    # fuse q/k/v along the output dimension (single projection kernel call)
    w_qkv = jnp.concatenate([wq, wk, wv], axis=0)
    s_qkv = jnp.concatenate([sq, sk, sv], axis=0)

    return dict(
        ln_w=ln_w,
        qkv_packed=pack_int4_kn(w_qkv, group_size),
        qkv_scale=prep_group_scales(s_qkv),
        o_packed=pack_int4_kn(wo, group_size),
        o_scale=prep_group_scales(so),
    )


# --------------------------------- forward ------------------------------------
def fused_llama_attention_forward(hidden_states, position_embeddings, params, *,
                                  n_heads, n_kv, head_dim, group_size):
    B, S, H = hidden_states.shape
    M = B * S
    D = head_dim
    scaling = D ** -0.5

    x = hidden_states.reshape(M, H)
    residual = x

    # fused RMSNorm + per-token fp8 activation quant
    qx, qx_scale = rmsnorm_quant(x, params["ln_w"].reshape(1, H))

    # fused q/k/v projection (int4 weights dequantized in-kernel)
    qkv = qlinear_i4fp8(qx, qx_scale, params["qkv_packed"], params["qkv_scale"],
                        group_size)

    # qkv_supply: RoPE is fused into the attention kernel prologue.
    # TODO(synk): KV cache (past_key_value / cache_position) not implemented.
    cos, sin = position_embeddings
    sign = jnp.concatenate([-jnp.ones((D // 2,), jnp.float32),
                            jnp.ones((D // 2,), jnp.float32)])
    sin_signed = sin * sign[None, :]

    # flash causal GQA attention + fused per-token fp8 output quantization
    attn_fp8, attn_scale = flash_attention_quant(
        qkv, cos, sin_signed, batch=B, seq=S, n_heads=n_heads, n_kv=n_kv,
        head_dim=D, scaling=scaling)

    # o_proj with fused residual add
    out = qlinear_i4fp8(attn_fp8, attn_scale, params["o_packed"], params["o_scale"],
                        group_size, residual=residual)
    return out.reshape(B, S, H), None     # (attn_output, attn_weights=None)


if __name__ == "__main__":
    B, S = 2, 128
    hidden = 256
    n_heads, n_kv = 2, 1
    head_dim = hidden // n_heads          # 128
    group_size = 128

    key = jax.random.PRNGKey(0)
    k_param, k_x = jax.random.split(key)
    params = init_params(k_param, hidden, n_heads, n_kv, head_dim, group_size)
    hidden_states = jax.random.normal(k_x, (B, S, hidden), jnp.float32
                                      ).astype(jnp.bfloat16)
    position_embeddings = rope_cos_sin(S, head_dim)

    out, attn_weights = fused_llama_attention_forward(
        hidden_states, position_embeddings, params,
        n_heads=n_heads, n_kv=n_kv, head_dim=head_dim, group_size=group_size)
    out = jax.block_until_ready(out)

    assert out.shape == (B, S, hidden) and out.dtype == jnp.bfloat16
    assert attn_weights is None
    assert bool(jnp.all(jnp.isfinite(out.astype(jnp.float32))))
    print("KERNEL_OK")
</pallas_src>

<mosaic_0001>
module attributes {stable_mosaic.version = 11 : i64} {
  func.func @_rmsnorm_quant_kernel(%arg0: i32, %arg1: memref<128x256xbf16, #tpu.memory_space<vmem>>, %arg2: memref<1x256xbf16, #tpu.memory_space<vmem>>, %arg3: memref<128x256xf8E4M3FN, #tpu.memory_space<vmem>>, %arg4: memref<128x1xbf16, #tpu.memory_space<vmem>>) attributes {dimension_semantics = [#tpu.dimension_semantics<parallel>], iteration_bounds = array<i64: 2>, scalar_prefetch = 0 : i64, scratch_operands = 0 : i64, tpu.core_type = #tpu.core_type<tc>, window_params = [{transform_indices = @transform_0, window_bounds = array<i64: 128, 256>}, {pipeline_mode = #tpu.pipeline_mode<synchronous>, transform_indices = @transform_1, window_bounds = array<i64: 1, 256>}, {transform_indices = @transform_2, window_bounds = array<i64: 128, 256>}, {transform_indices = @transform_3, window_bounds = array<i64: 128, 1>}]} {
    %c0 = arith.constant 0 : index
    %c0_0 = arith.constant 0 : index
    %0 = vector.load %arg1[%c0, %c0_0] : memref<128x256xbf16, #tpu.memory_space<vmem>>, vector<128x256xbf16>
    %1 = arith.extf %0 : vector<128x256xbf16> to vector<128x256xf32>
    %2 = arith.mulf %1, %1 : vector<128x256xf32>
    %cst = arith.constant dense<0.000000e+00> : vector<128xf32>
    %3 = vector.multi_reduction <add>, %2, %cst [1] : vector<128x256xf32> to vector<128xf32>
    %4 = vector.shape_cast %3 : vector<128xf32> to vector<128x1xf32>
    %cst_1 = arith.constant 2.560000e+02 : f32
    %5 = vector.broadcast %cst_1 : f32 to vector<128x1xf32>
    %6 = arith.divf %4, %5 : vector<128x1xf32>
    %cst_2 = arith.constant 9.99999997E-7 : f32
    %7 = vector.broadcast %cst_2 : f32 to vector<128x1xf32>
    %8 = arith.addf %6, %7 : vector<128x1xf32>
    %9 = math.rsqrt %8 : vector<128x1xf32>
    %10 = vector.broadcast %9 : vector<128x1xf32> to vector<128x256xf32>
    %11 = arith.mulf %1, %10 : vector<128x256xf32>
    %c0_3 = arith.constant 0 : index
    %c0_4 = arith.constant 0 : index
    %12 = vector.load %arg2[%c0_3, %c0_4] : memref<1x256xbf16, #tpu.memory_space<vmem>>, vector<1x256xbf16>
    %13 = arith.extf %12 : vector<1x256xbf16> to vector<1x256xf32>
    %14 = vector.broadcast %13 : vector<1x256xf32> to vector<128x256xf32>
    %15 = arith.mulf %11, %14 : vector<128x256xf32>
    %16 = math.absf %15 : vector<128x256xf32>
    %cst_5 = arith.constant dense<0xFF800000> : vector<128xf32>
    %17 = vector.multi_reduction <maximumf>, %16, %cst_5 [1] : vector<128x256xf32> to vector<128xf32>
    %18 = vector.shape_cast %17 : vector<128xf32> to vector<128x1xf32>
    %cst_6 = arith.constant 9.99999997E-7 : f32
    %19 = vector.broadcast %cst_6 : f32 to vector<128x1xf32>
    %20 = arith.maximumf %18, %19 : vector<128x1xf32>
    %cst_7 = arith.constant 0.00223214296 : f32
    %21 = vector.broadcast %cst_7 : f32 to vector<128x1xf32>
    %22 = arith.mulf %20, %21 : vector<128x1xf32>
    %23 = arith.truncf %22 : vector<128x1xf32> to vector<128x1xbf16>
    %c0_8 = arith.constant 0 : index
    %c0_9 = arith.constant 0 : index
    %24 = vector.load %arg4[%c0_8, %c0_9] : memref<128x1xbf16, #tpu.memory_space<vmem>>, vector<128x1xbf16>
    tpu.vector_store %arg4[%c0_8, %c0_9], %23 {strides = array<i32>} : memref<128x1xbf16, #tpu.memory_space<vmem>>, vector<128x1xbf16>,
    %cst_10 = arith.constant 4.480000e+02 : f32
    %25 = vector.broadcast %cst_10 : f32 to vector<128x1xf32>
    %26 = arith.divf %25, %20 : vector<128x1xf32>
    %27 = vector.broadcast %26 : vector<128x1xf32> to vector<128x256xf32>
    %28 = arith.mulf %15, %27 : vector<128x256xf32>
    %cst_11 = arith.constant -4.480000e+02 : f32
    %cst_12 = arith.constant 4.480000e+02 : f32
    %29 = vector.broadcast %cst_11 : f32 to vector<128x256xf32>
    %30 = arith.maximumf %29, %28 : vector<128x256xf32>
    %31 = vector.broadcast %cst_12 : f32 to vector<128x256xf32>
    %32 = arith.minimumf %31, %30 : vector<128x256xf32>
    %33 = arith.truncf %32 : vector<128x256xf32> to vector<128x256xf8E4M3FN>
    %c0_13 = arith.constant 0 : index
    %c0_14 = arith.constant 0 : index
    %34 = vector.load %arg3[%c0_13, %c0_14] : memref<128x256xf8E4M3FN, #tpu.memory_space<vmem>>, vector<128x256xf8E4M3FN>
    tpu.vector_store %arg3[%c0_13, %c0_14], %33 {strides = array<i32>} : memref<128x256xf8E4M3FN, #tpu.memory_space<vmem>>, vector<128x256xf8E4M3FN>,
    return
  }
  func.func @transform_0(%arg0: i32) -> (i32, i32) {
    %c0_i32 = arith.constant 0 : i32
    %c0_i32_0 = arith.constant 0 : i32
    return %arg0, %c0_i32 : i32, i32
  }
  func.func @transform_1(%arg0: i32) -> (i32, i32) {
    %c0_i32 = arith.constant 0 : i32
    %c0_i32_0 = arith.constant 0 : i32
    %c0_i32_1 = arith.constant 0 : i32
    return %c0_i32, %c0_i32_0 : i32, i32
  }
  func.func @transform_2(%arg0: i32) -> (i32, i32) {
    %c0_i32 = arith.constant 0 : i32
    %c0_i32_0 = arith.constant 0 : i32
    return %arg0, %c0_i32 : i32, i32
  }
  func.func @transform_3(%arg0: i32) -> (i32, i32) {
    %c0_i32 = arith.constant 0 : i32
    %c0_i32_0 = arith.constant 0 : i32
    return %arg0, %c0_i32 : i32, i32
  }
}

</mosaic_0001>

<llo_original>
// kernel: tpu_custom_call.1
$region0: #{tpu_custom_call.1}
  #allocation0 [shape = 'u32[]', space=smem, size = 0x4, offset = 0x4, fixed_abs, tag = 'smem constant byte address 0x4 - core index']
  #allocation1 [shape = 'u32[144,128]{1,0:T(1,128)}', space=vmem, size = 0x12000, scoped, tag = 'internal scratch']
  %s0 = inlined_call_operand.hbm [shape: bf16[256,256], index: 0, kind: input, shape index: {}]
  %s1 = inlined_call_operand.hbm [shape: bf16[1,256], index: 1, kind: input, shape index: {}]
  %s2 = inlined_call_operand.hbm [shape: f8e4m3fn[256,256], index: 2, kind: output, shape index: {0}]
  %s3 = inlined_call_operand.vmem [shape: bf16[256,1], index: 3, kind: output, shape index: {1}]
  %4 = xla_tuple %s2, %s3
  %s5 = sld [smem:[#allocation0]]
  $region57: #{tpu_custom_call.1} parent=0
    _
  %s7 = ssub.s32 1, %s5
  %s8 = scalar_select 0, %s7, %s5
  $region1: #{tpu_custom_call.1} parent=0
    #allocation2 [shape = 'u8[131072]{0}', space=vmem, size = 0x20000, scoped, tag = 'input window, operand 0']
    #allocation3 [shape = 's32[2]{0}', space=sflag, size = 0x8, scoped, tag = 'scoped memory for tpu_custom_call.1']
    #allocation4 [shape = 's32[2]{0}', space=sflag, size = 0x8, scoped, tag = 'scoped memory for tpu_custom_call.1']
    #allocation5 [shape = 'u8[1024]{0}', space=vmem, size = 0x400, scoped, tag = 'input window, operand 1, single buffered']
    #allocation6 [shape = 's32[1]{0}', space=sflag, size = 0x4, scoped, tag = 'scoped memory for tpu_custom_call.1']
    #allocation7 [shape = 'u8[65536]{0}', space=vmem, size = 0x10000, scoped, tag = 'output window, operand 0']
    %9 = vsyncpa [#allocation3], 0
    %s10 = scalar_lea.sflag [#allocation3], 1
    %11 = vsyncpa %s10, 0
    %12 = vsyncpa [#allocation6], 0
    %13 = vsyncpa [#allocation4], 0
    %s14 = scalar_lea.sflag [#allocation4], 1
    %15 = vsyncpa %s14, 0
    loop: start=0, step=1, limit=4
    $region2: #{tpu_custom_call.1} parent=1 // loop_pre_header
      _
    $region3: #{tpu_custom_call.1} parent=1 // loop_header
      %s17 = sphi 0, %s21
      %p18 = scmp.ge.s32.totalorder %s17, 4
      %s27 = sphi 0, %s29
      %s30 = sphi 0, %s27
      %s31 = sphi 0, %s30
      %s47 = sphi 0, %s31
      %s51 = sphi 0, %s51
      %s53 = sphi 0, %s51
      %s54 = sphi 0, %s53
      %s68 = sphi 0, %s54
      %s74 = sphi 0, %s76
      %s77 = sphi 0, %s74
      %s78 = sphi 0, %s77
      %s94 = sphi 0, %s78
      %s100 = sphi 0, %s102
      %s103 = sphi 0, %s100
      %s104 = sphi 0, %s103
      %s120 = sphi 0, %s104
    $region4: #{tpu_custom_call.1} parent=1 // loop_header_branch
      %20 = sbr.rel (%p18) target = $region8
    $region5: #{tpu_custom_call.1} parent=1 // loop_body
      %s22 = ssub.s32 %s17, 1
      %s23 = ssub.s32 %s17, 2
      %s24 = sadd.s32 %s17, 1
      %s25 = ssub.s32 %s17, %s24
      %p26 = scmp.eq.s32.totalorder %s25, 0
      %s28 = sadd.s32 %s27, 1
      %s29 = scalar_select %p26, %s27, %s28
      %p32 = pneg %p26
      %p33 = scmp.eq.s32.totalorder %s17, 1
      %p34 = por %p32, %p33
      %p35 = scmp.ne.s32.totalorder %s27, %s30
      %p36 = scmp.eq.s32.totalorder %s17, 0
      %p37 = por %p35, %p36
      %p38 = scmp.ne.s32.totalorder %s27, %s30
      %p39 = scmp.eq.s32.totalorder %s22, 1
      %p40 = por %p38, %p39
      %p41 = scmp.ne.s32.totalorder %s30, %s31
      %p42 = scmp.eq.s32.totalorder %s22, 0
      %p43 = por %p41, %p42
      %p44 = scmp.ne.s32.totalorder %s30, %s31
      %p45 = scmp.eq.s32.totalorder %s23, 1
      %p46 = por %p44, %p45
      %p48 = scmp.ne.s32.totalorder %s31, %s47
      %p49 = scmp.eq.s32.totalorder %s23, 0
      %p50 = por %p48, %p49
      %s52 = sadd.s32 %s51, 1
      %p55 = scmp.eq.s32.totalorder %s17, 1
      %p56 = scmp.ne.s32.totalorder %s51, %s53
      %p57 = scmp.eq.s32.totalorder %s17, 0
      %p58 = por %p56, %p57
      %p59 = scmp.ne.s32.totalorder %s51, %s53
      %p60 = scmp.eq.s32.totalorder %s22, 1
      %p61 = por %p59, %p60
      %p62 = scmp.ne.s32.totalorder %s53, %s54
      %p63 = scmp.eq.s32.totalorder %s22, 0
      %p64 = por %p62, %p63
      %p65 = scmp.ne.s32.totalorder %s53, %s54
      %p66 = scmp.eq.s32.totalorder %s23, 1
      %p67 = por %p65, %p66
      %p69 = scmp.ne.s32.totalorder %s54, %s68
      %p70 = scmp.eq.s32.totalorder %s23, 0
      %p71 = por %p69, %p70
      %s72 = ssub.s32 %s17, %s24
      %p73 = scmp.eq.s32.totalorder %s72, 0
      %s75 = sadd.s32 %s74, 1
      %s76 = scalar_select %p73, %s74, %s75
      %p79 = pneg %p73
      %p80 = scmp.eq.s32.totalorder %s17, 1
      %p81 = por %p79, %p80
      %p82 = scmp.ne.s32.totalorder %s74, %s77
      %p83 = scmp.eq.s32.totalorder %s17, 0
      %p84 = por %p82, %p83
      %p85 = scmp.ne.s32.totalorder %s74, %s77
      %p86 = scmp.eq.s32.totalorder %s22, 1
      %p87 = por %p85, %p86
      %p88 = scmp.ne.s32.totalorder %s77, %s78
      %p89 = scmp.eq.s32.totalorder %s22, 0
      %p90 = por %p88, %p89
      %p91 = scmp.ne.s32.totalorder %s77, %s78
      %p92 = scmp.eq.s32.totalorder %s23, 1
      %p93 = por %p91, %p92
      %p95 = scmp.ne.s32.totalorder %s78, %s94
      %p96 = scmp.eq.s32.totalorder %s23, 0
      %p97 = por %p95, %p96
      %s98 = ssub.s32 %s17, %s24
      %p99 = scmp.eq.s32.totalorder %s98, 0
      %s101 = sadd.s32 %s100, 1
      %s102 = scalar_select %p99, %s100, %s101
      %p105 = pneg %p99
      %p106 = scmp.eq.s32.totalorder %s17, 1
      %p107 = por %p105, %p106
      %p108 = scmp.ne.s32.totalorder %s100, %s103
      %p109 = scmp.eq.s32.totalorder %s17, 0
      %p110 = por %p108, %p109
      %p111 = scmp.ne.s32.totalorder %s100, %s103
      %p112 = scmp.eq.s32.totalorder %s22, 1
      %p113 = por %p111, %p112
      %p114 = scmp.ne.s32.totalorder %s103, %s104
      %p115 = scmp.eq.s32.totalorder %s22, 0
      %p116 = por %p114, %p115
      %p117 = scmp.ne.s32.totalorder %s103, %s104
      %p118 = scmp.eq.s32.totalorder %s23, 1
      %p119 = por %p117, %p118
      %p121 = scmp.ne.s32.totalorder %s104, %s120
      %p122 = scmp.eq.s32.totalorder %s23, 0
      %p123 = por %p121, %p122
      %p124 = scmp.le.s32.totalorder 1, %s17
      %p125 = scmp.lt.s32.totalorder %s17, 3
      %p126 = pnand %p124, %p125
      %p127 = pneg %p126
      // Predicated region
      $region9: #{tpu_custom_call.1} parent=5 // pred_check
        _
      $region10: #{tpu_custom_call.1} parent=5 // pred_check_branch
        %129 = sbr.rel (%p126) target = $region12
      $region11: #{tpu_custom_call.1} parent=5 // pred_region
        %s130 = ssub.s32 %s17, 1
        // Predicated region
        $region13: #{tpu_custom_call.1} parent=11 // pred_check
          %p131 = pneg %p64
        $region14: #{tpu_custom_call.1} parent=11 // pred_check_branch
          %133 = sbr.rel (%p131) target = $region16
        $region15: #{tpu_custom_call.1} parent=11 // pred_region
          %s135 = ssub.s32 32, 32
          %136 = vsyncadd [#allocation6], %s135
          %s138 = sshll.u32 [#allocation5], 4
          %s139 = int_to_ptr.vmem [resolvable:$true] %s138
          %141 = dma.hbm_to_vmem [thread:$0]  %s1, 32, %s139, [#allocation6]
        $region16: #{tpu_custom_call.1} parent=11 // pred_fallthru
          _
      $region12: #{tpu_custom_call.1} parent=5 // pred_fallthru
        _
      %p142 = scmp.lt.s32.totalorder %s17, 2
      // Predicated region
      $region17: #{tpu_custom_call.1} parent=5 // pred_check
        %p143 = pneg %p142
      $region18: #{tpu_custom_call.1} parent=5 // pred_check_branch
        %145 = sbr.rel (%p143) target = $region20
      $region19: #{tpu_custom_call.1} parent=5 // pred_region
        // Predicated region
        $region21: #{tpu_custom_call.1} parent=19 // pred_check
          %p146 = pneg %p37
        $region22: #{tpu_custom_call.1} parent=19 // pred_check_branch
          %148 = sbr.rel (%p146) target = $region24
        $region23: #{tpu_custom_call.1} parent=19 // pred_region
          %s149 = sand.u32 %s27, 1
          %s150 = scalar_lea.sflag [#allocation3], %s149
          %s151 = sand.u32 %s27, 1
          %s152 = smul.addr %s151, 128
          %s153 = scalar_lea.vmem [#allocation2], %s152
          %s154 = smul.u32 16, %s17
          %s156 = ssub.s32 2048, 2048
          %157 = vsyncadd %s150, %s156
          %s158 = smul.addr %s154, 2
          %s159 = smul.addr %s158, 64
          %s160 = scalar_lea.hbm %s0, %s159
          %s161 = sshll.u32 %s153, 4
          %s162 = int_to_ptr.vmem [resolvable:$true] %s161
          %167 = dma.hbm_to_vmem [thread:$0]  %s160, 2048, %s162, %s150, 128, 128, 8
        $region24: #{tpu_custom_call.1} parent=19 // pred_fallthru
          _
      $region20: #{tpu_custom_call.1} parent=5 // pred_fallthru
        _
      %p168 = scmp.le.s32.totalorder 1, %s17
      %p169 = scmp.lt.s32.totalorder %s17, 3
      %p170 = pnand %p168, %p169
      %p171 = pneg %p170
      // Predicated region
      $region25: #{tpu_custom_call.1} parent=5 // pred_check
        _
      $region26: #{tpu_custom_call.1} parent=5 // pred_check_branch
        %173 = sbr.rel (%p170) target = $region28
      $region27: #{tpu_custom_call.1} parent=5 // pred_region
        %s174 = ssub.s32 %s17, 1
        %s175 = sand.u32 %s30, 1
        %s176 = scalar_lea.sflag [#allocation3], %s175
        %s177 = sand.u32 %s30, 1
        %s178 = smul.addr %s177, 128
        %s179 = scalar_lea.vmem [#allocation2], %s178
        // Predicated region
        $region29: #{tpu_custom_call.1} parent=27 // pred_check
          %p180 = pneg %p43
        $region30: #{tpu_custom_call.1} parent=27 // pred_check_branch
          %182 = sbr.rel (%p180) target = $region32
        $region31: #{tpu_custom_call.1} parent=27 // pred_region
          %183 = dma.done %s176, 2048
        $region32: #{tpu_custom_call.1} parent=27 // pred_fallthru
          _
        // Predicated region
        $region33: #{tpu_custom_call.1} parent=27 // pred_check
          %p184 = pneg %p64
        $region34: #{tpu_custom_call.1} parent=27 // pred_check_branch
          %186 = sbr.rel (%p184) target = $region36
        $region35: #{tpu_custom_call.1} parent=27 // pred_region
          %187 = dma.done [#allocation6], 32
        $region36: #{tpu_custom_call.1} parent=27 // pred_fallthru
          _
        %s188 = sand.u32 %s30, 1
        %s189 = scalar_lea.sflag [#allocation3], %s188
        %s190 = sand.u32 %s30, 1
        %s191 = smul.addr %s190, 128
        %s192 = scalar_lea.vmem [#allocation2], %s191
        %p193 = pneg %p43
        %p194 = pneg %p40
        %p195 = pneg %p64
        %p196 = pneg %p61
        %p197 = pneg %p90
        %p198 = pneg %p87
        %s199 = sand.u32 %s77, 1
        %s200 = scalar_lea.sflag [#allocation4], %s199
        %s201 = sand.u32 %s77, 1
        %s202 = smul.addr %s201, 64
        %s203 = scalar_lea.vmem [#allocation7], %s202
        %p204 = pneg %p116
        %p205 = pneg %p113
        %s206 = smul.u32 16, %s22
        %p207 = scmp.lt.s32.totalorder %s206, 31
        %s208 = scalar_select %p207, %s206, 31
        %s209 = smul.addr %s208, 4
        %s210 = scalar_lea.vmem %s3, %s209
        %s211 = smul.u32 16, %s22
        %s212 = smul.u32 4, %s22
        %s213 = smul.u32 16, %s22
        %p214 = scmp.lt.s32.totalorder %s213, 31
        %s215 = scalar_select %p214, %s213, 31
        %s216 = smul.addr %s215, 4
        %s217 = scalar_lea.vmem %s3, %s216
        %s218 = smul.u32 16, %s22
        %v219 = vld [vmem:[%s179] sm:$0xff]
        %v220 = vld [vmem:[%s179 + $0x8] sm:$0xff]
        %v221 = vld [vmem:[%s179 + $0x10] sm:$0xff]
        %v222 = vld [vmem:[%s179 + $0x18] sm:$0xff]
        %v223 = vld [vmem:[%s179 + $0x20] sm:$0xff]
        %v224 = vld [vmem:[%s179 + $0x28] sm:$0xff]
        %v225 = vld [vmem:[%s179 + $0x30] sm:$0xff]
        %v226 = vld [vmem:[%s179 + $0x38] sm:$0xff]
        %v227 = vld [vmem:[%s179 + $0x40] sm:$0xff]
        %v228 = vld [vmem:[%s179 + $0x48] sm:$0xff]
        %v229 = vld [vmem:[%s179 + $0x50] sm:$0xff]
        %v230 = vld [vmem:[%s179 + $0x58] sm:$0xff]
        %v231 = vld [vmem:[%s179 + $0x60] sm:$0xff]
        %v232 = vld [vmem:[%s179 + $0x68] sm:$0xff]
        %v233 = vld [vmem:[%s179 + $0x70] sm:$0xff]
        %v234 = vld [vmem:[%s179 + $0x78] sm:$0xff]
        %v235 = vunpack.c.l.bf16 %v219
        %v236 = vunpack.c.h.bf16 %v219
        %v237 = vunpack.c.l.bf16 %v220
        %v238 = vunpack.c.h.bf16 %v220
        %v239 = vunpack.c.l.bf16 %v221
        %v240 = vunpack.c.h.bf16 %v221
        %v241 = vunpack.c.l.bf16 %v222
        %v242 = vunpack.c.h.bf16 %v222
        %v243 = vunpack.c.l.bf16 %v223
        %v244 = vunpack.c.h.bf16 %v223
        %v245 = vunpack.c.l.bf16 %v224
        %v246 = vunpack.c.h.bf16 %v224
        %v247 = vunpack.c.l.bf16 %v225
        %v248 = vunpack.c.h.bf16 %v225
        %v249 = vunpack.c.l.bf16 %v226
        %v250 = vunpack.c.h.bf16 %v226
        %v251 = vunpack.c.l.bf16 %v227
        %v252 = vunpack.c.h.bf16 %v227
        %v253 = vunpack.c.l.bf16 %v228
        %v254 = vunpack.c.h.bf16 %v228
        %v255 = vunpack.c.l.bf16 %v229
        %v256 = vunpack.c.h.bf16 %v229
        %v257 = vunpack.c.l.bf16 %v230
        %v258 = vunpack.c.h.bf16 %v230
        %v259 = vunpack.c.l.bf16 %v231
        %v260 = vunpack.c.h.bf16 %v231
        %v261 = vunpack.c.l.bf16 %v232
        %v262 = vunpack.c.h.bf16 %v232
        %v263 = vunpack.c.l.bf16 %v233
        %v264 = vunpack.c.h.bf16 %v233
        %v265 = vunpack.c.l.bf16 %v234
        %v266 = vunpack.c.h.bf16 %v234
        %v267 = vmul.f32 %v235, %v235
        %v268 = vmul.f32 %v236, %v236
        %v269 = vmul.f32 %v237, %v237
        %v270 = vmul.f32 %v238, %v238
        %v271 = vmul.f32 %v239, %v239
        %v272 = vmul.f32 %v240, %v240
        %v273 = vmul.f32 %v241, %v241
        %v274 = vmul.f32 %v242, %v242
        %v275 = vmul.f32 %v243, %v243
        %v276 = vmul.f32 %v244, %v244
        %v277 = vmul.f32 %v245, %v245
        %v278 = vmul.f32 %v246, %v246
        %v279 = vmul.f32 %v247, %v247
        %v280 = vmul.f32 %v248, %v248
        %v281 = vmul.f32 %v249, %v249
        %v282 = vmul.f32 %v250, %v250
        %v283 = vmul.f32 %v251, %v251
        %v284 = vmul.f32 %v252, %v252
        %v285 = vmul.f32 %v253, %v253
        %v286 = vmul.f32 %v254, %v254
        %v287 = vmul.f32 %v255, %v255
        %v288 = vmul.f32 %v256, %v256
        %v289 = vmul.f32 %v257, %v257
        %v290 = vmul.f32 %v258, %v258
        %v291 = vmul.f32 %v259, %v259
        %v292 = vmul.f32 %v260, %v260
        %v293 = vmul.f32 %v261, %v261
        %v294 = vmul.f32 %v262, %v262
        %v295 = vmul.f32 %v263, %v263
        %v296 = vmul.f32 %v264, %v264
        %v297 = vmul.f32 %v265, %v265
        %v298 = vmul.f32 %v266, %v266
        %v299 = vadd.f32 %v267, %v268
        %300 = vadd.xlane.f32.xlu0 %v299
        %v301 = vpop.xlane.xlu0 %300
        %v302 = vadd.f32 %v269, %v270
        %303 = vadd.xlane.f32.xlu0 %v302
        %v304 = vpop.xlane.xlu0 %303
        %v305 = vadd.f32 %v271, %v272
        %306 = vadd.xlane.f32.xlu0 %v305
        %v307 = vpop.xlane.xlu0 %306
        %v308 = vadd.f32 %v273, %v274
        %309 = vadd.xlane.f32.xlu0 %v308
        %v310 = vpop.xlane.xlu0 %309
        %v311 = vadd.f32 %v275, %v276
        %312 = vadd.xlane.f32.xlu0 %v311
        %v313 = vpop.xlane.xlu0 %312
        %v314 = vadd.f32 %v277, %v278
        %315 = vadd.xlane.f32.xlu0 %v314
        %v316 = vpop.xlane.xlu0 %315
        %v317 = vadd.f32 %v279, %v280
        %318 = vadd.xlane.f32.xlu0 %v317
        %v319 = vpop.xlane.xlu0 %318
        %v320 = vadd.f32 %v281, %v282
        %321 = vadd.xlane.f32.xlu0 %v320
        %v322 = vpop.xlane.xlu0 %321
        %v323 = vadd.f32 %v283, %v284
        %324 = vadd.xlane.f32.xlu0 %v323
        %v325 = vpop.xlane.xlu0 %324
        %v326 = vadd.f32 %v285, %v286
        %327 = vadd.xlane.f32.xlu0 %v326
        %v328 = vpop.xlane.xlu0 %327
        %v329 = vadd.f32 %v287, %v288
        %330 = vadd.xlane.f32.xlu0 %v329
        %v331 = vpop.xlane.xlu0 %330
        %v332 = vadd.f32 %v289, %v290
        %333 = vadd.xlane.f32.xlu0 %v332
        %v334 = vpop.xlane.xlu0 %333
        %v335 = vadd.f32 %v291, %v292
        %336 = vadd.xlane.f32.xlu0 %v335
        %v337 = vpop.xlane.xlu0 %336
        %v338 = vadd.f32 %v293, %v294
        %339 = vadd.xlane.f32.xlu0 %v338
        %v340 = vpop.xlane.xlu0 %339
        %v341 = vadd.f32 %v295, %v296
        %342 = vadd.xlane.f32.xlu0 %v341
        %v343 = vpop.xlane.xlu0 %342
        %v344 = vadd.f32 %v297, %v298
        %345 = vadd.xlane.f32.xlu0 %v344
        %v346 = vpop.xlane.xlu0 %345
        %v347 = vrcp.pop 256.0
        %v348 = vmul.f32 %v301, %v347
        %v349 = vmul.f32 %v304, %v347
        %v350 = vmul.f32 %v307, %v347
        %v351 = vmul.f32 %v310, %v347
        %v352 = vmul.f32 %v313, %v347
        %v353 = vmul.f32 %v316, %v347
        %v354 = vmul.f32 %v319, %v347
        %v355 = vmul.f32 %v322, %v347
        %v356 = vmul.f32 %v325, %v347
        %v357 = vmul.f32 %v328, %v347
        %v358 = vmul.f32 %v331, %v347
        %v359 = vmul.f32 %v334, %v347
        %v360 = vmul.f32 %v337, %v347
        %v361 = vmul.f32 %v340, %v347
        %v362 = vmul.f32 %v343, %v347
        %v363 = vmul.f32 %v346, %v347
        %v364 = vadd.f32 %v348, 1e-06
        %v365 = vadd.f32 %v349, 1e-06
        %v366 = vadd.f32 %v350, 1e-06
        %v367 = vadd.f32 %v351, 1e-06
        %v368 = vadd.f32 %v352, 1e-06
        %v369 = vadd.f32 %v353, 1e-06
        %v370 = vadd.f32 %v354, 1e-06
        %v371 = vadd.f32 %v355, 1e-06
        %v372 = vadd.f32 %v356, 1e-06
        %v373 = vadd.f32 %v357, 1e-06
        %v374 = vadd.f32 %v358, 1e-06
        %v375 = vadd.f32 %v359, 1e-06
        %v376 = vadd.f32 %v360, 1e-06
        %v377 = vadd.f32 %v361, 1e-06
        %v378 = vadd.f32 %v362, 1e-06
        %v379 = vadd.f32 %v363, 1e-06
        %v380 = vrsqrt.pop %v364
        %v381 = vrsqrt.pop %v365
        %v382 = vrsqrt.pop %v366
        %v383 = vrsqrt.pop %v367
        %v384 = vrsqrt.pop %v368
        %v385 = vrsqrt.pop %v369
        %v386 = vrsqrt.pop %v370
        %v387 = vrsqrt.pop %v371
        %v388 = vrsqrt.pop %v372
        %v389 = vrsqrt.pop %v373
        %v390 = vrsqrt.pop %v374
        %v391 = vrsqrt.pop %v375
        %v392 = vrsqrt.pop %v376
        %v393 = vrsqrt.pop %v377
        %v394 = vrsqrt.pop %v378
        %v395 = vrsqrt.pop %v379
        %v396 = vmul.f32 %v235, %v380
        %v397 = vmul.f32 %v236, %v380
        %v398 = vmul.f32 %v237, %v381
        %v399 = vmul.f32 %v238, %v381
        %v400 = vmul.f32 %v239, %v382
        %v401 = vmul.f32 %v240, %v382
        %v402 = vmul.f32 %v241, %v383
        %v403 = vmul.f32 %v242, %v383
        %v404 = vmul.f32 %v243, %v384
        %v405 = vmul.f32 %v244, %v384
        %v406 = vmul.f32 %v245, %v385
        %v407 = vmul.f32 %v246, %v385
        %v408 = vmul.f32 %v247, %v386
        %v409 = vmul.f32 %v248, %v386
        %v410 = vmul.f32 %v249, %v387
        %v411 = vmul.f32 %v250, %v387
        %v412 = vmul.f32 %v251, %v388
        %v413 = vmul.f32 %v252, %v388
        %v414 = vmul.f32 %v253, %v389
        %v415 = vmul.f32 %v254, %v389
        %v416 = vmul.f32 %v255, %v390
        %v417 = vmul.f32 %v256, %v390
        %v418 = vmul.f32 %v257, %v391
        %v419 = vmul.f32 %v258, %v391
        %v420 = vmul.f32 %v259, %v392
        %v421 = vmul.f32 %v260, %v392
        %v422 = vmul.f32 %v261, %v393
        %v423 = vmul.f32 %v262, %v393
        %v424 = vmul.f32 %v263, %v394
        %v425 = vmul.f32 %v264, %v394
        %v426 = vmul.f32 %v265, %v395
        %v427 = vmul.f32 %v266, %v395
        %v428 = vld [vmem:[#allocation5] sm:$0x3]
        %v429 = vunpack.c.l.bf16 %v428
        %v431 = vlaneseq
        %v432 = vshrl.u32 %v431, 7
        %v433 = vsub.s32 0, %v432
        %v434 = vrot.slane %v429, %v433
        %v435 = vlaneseq
        %v436 = vshrl.u32 %v435, 7
        %v437 = vsub.s32 2, %v436
        %v438 = vrot.slane %v429, %v437
        %v441 = vlaneseq
        %v442 = vshrl.u32 %v441, 7
        %v443 = vsub.s32 0, %v442
        %v444 = vrot.slane %v434, %v443
        %v445 = vlaneseq
        %v446 = vshrl.u32 %v445, 7
        %v447 = vsub.s32 0, %v446
        %v448 = vrot.slane %v438, %v447
        %v449 = vmul.f32 %v396, %v444
        %v450 = vmul.f32 %v397, %v448
        %v451 = vmul.f32 %v398, %v444
        %v452 = vmul.f32 %v399, %v448
        %v453 = vmul.f32 %v400, %v444
        %v454 = vmul.f32 %v401, %v448
        %v455 = vmul.f32 %v402, %v444
        %v456 = vmul.f32 %v403, %v448
        %v457 = vmul.f32 %v404, %v444
        %v458 = vmul.f32 %v405, %v448
        %v459 = vmul.f32 %v406, %v444
        %v460 = vmul.f32 %v407, %v448
        %v461 = vmul.f32 %v408, %v444
        %v462 = vmul.f32 %v409, %v448
        %v463 = vmul.f32 %v410, %v444
        %v464 = vmul.f32 %v411, %v448
        %v465 = vmul.f32 %v412, %v444
        %v466 = vmul.f32 %v413, %v448
        %v467 = vmul.f32 %v414, %v444
        %v468 = vmul.f32 %v415, %v448
        %v469 = vmul.f32 %v416, %v444
        %v470 = vmul.f32 %v417, %v448
        %v471 = vmul.f32 %v418, %v444
        %v472 = vmul.f32 %v419, %v448
        %v473 = vmul.f32 %v420, %v444
        %v474 = vmul.f32 %v421, %v448
        %v475 = vmul.f32 %v422, %v444
        %v476 = vmul.f32 %v423, %v448
        %v477 = vmul.f32 %v424, %v444
        %v478 = vmul.f32 %v425, %v448
        %v479 = vmul.f32 %v426, %v444
        %v480 = vmul.f32 %v427, %v448
        %v481 = vand.u32 2147483647, %v449
        %v482 = vand.u32 2147483647, %v450
        %v483 = vand.u32 2147483647, %v451
        %v484 = vand.u32 2147483647, %v452
        %v485 = vand.u32 2147483647, %v453
        %v486 = vand.u32 2147483647, %v454
        %v487 = vand.u32 2147483647, %v455
        %v488 = vand.u32 2147483647, %v456
        %v489 = vand.u32 2147483647, %v457
        %v490 = vand.u32 2147483647, %v458
        %v491 = vand.u32 2147483647, %v459
        %v492 = vand.u32 2147483647, %v460
        %v493 = vand.u32 2147483647, %v461
        %v494 = vand.u32 2147483647, %v462
        %v495 = vand.u32 2147483647, %v463
        %v496 = vand.u32 2147483647, %v464
        %v497 = vand.u32 2147483647, %v465
        %v498 = vand.u32 2147483647, %v466
        %v499 = vand.u32 2147483647, %v467
        %v500 = vand.u32 2147483647, %v468
        %v501 = vand.u32 2147483647, %v469
        %v502 = vand.u32 2147483647, %v470
        %v503 = vand.u32 2147483647, %v471
        %v504 = vand.u32 2147483647, %v472
        %v505 = vand.u32 2147483647, %v473
        %v506 = vand.u32 2147483647, %v474
        %v507 = vand.u32 2147483647, %v475
        %v508 = vand.u32 2147483647, %v476
        %v509 = vand.u32 2147483647, %v477
        %v510 = vand.u32 2147483647, %v478
        %v511 = vand.u32 2147483647, %v479
        %v512 = vand.u32 2147483647, %v480
        %v513 = vmax.f32 %v481, %v482
        %514 = vmax.xlane.f32.xlu0 %v513
        %v515 = vpop.xlane.xlu0 %514
        %v516 = vmax.f32 %v483, %v484
        %517 = vmax.xlane.f32.xlu0 %v516
        %v518 = vpop.xlane.xlu0 %517
        %v519 = vmax.f32 %v485, %v486
        %520 = vmax.xlane.f32.xlu0 %v519
        %v521 = vpop.xlane.xlu0 %520
        %v522 = vmax.f32 %v487, %v488
        %523 = vmax.xlane.f32.xlu0 %v522
        %v524 = vpop.xlane.xlu0 %523
        %v525 = vmax.f32 %v489, %v490
        %526 = vmax.xlane.f32.xlu0 %v525
        %v527 = vpop.xlane.xlu0 %526
        %v528 = vmax.f32 %v491, %v492
        %529 = vmax.xlane.f32.xlu0 %v528
        %v530 = vpop.xlane.xlu0 %529
        %v531 = vmax.f32 %v493, %v494
        %532 = vmax.xlane.f32.xlu0 %v531
        %v533 = vpop.xlane.xlu0 %532
        %v534 = vmax.f32 %v495, %v496
        %535 = vmax.xlane.f32.xlu0 %v534
        %v536 = vpop.xlane.xlu0 %535
        %v537 = vmax.f32 %v497, %v498
        %538 = vmax.xlane.f32.xlu0 %v537
        %v539 = vpop.xlane.xlu0 %538
        %v540 = vmax.f32 %v499, %v500
        %541 = vmax.xlane.f32.xlu0 %v540
        %v542 = vpop.xlane.xlu0 %541
        %v543 = vmax.f32 %v501, %v502
        %544 = vmax.xlane.f32.xlu0 %v543
        %v545 = vpop.xlane.xlu0 %544
        %v546 = vmax.f32 %v503, %v504
        %547 = vmax.xlane.f32.xlu0 %v546
        %v548 = vpop.xlane.xlu0 %547
        %v549 = vmax.f32 %v505, %v506
        %550 = vmax.xlane.f32.xlu0 %v549
        %v551 = vpop.xlane.xlu0 %550
        %v552 = vmax.f32 %v507, %v508
        %553 = vmax.xlane.f32.xlu0 %v552
        %v554 = vpop.xlane.xlu0 %553
        %v555 = vmax.f32 %v509, %v510
        %556 = vmax.xlane.f32.xlu0 %v555
        %v557 = vpop.xlane.xlu0 %556
        %v558 = vmax.f32 %v511, %v512
        %559 = vmax.xlane.f32.xlu0 %v558
        %v560 = vpop.xlane.xlu0 %559
        %v561 = vmax.f32 %v515, 1e-06
        %v562 = vmax.f32 %v518, 1e-06
        %v563 = vmax.f32 %v521, 1e-06
        %v564 = vmax.f32 %v524, 1e-06
        %v565 = vmax.f32 %v527, 1e-06
        %v566 = vmax.f32 %v530, 1e-06
        %v567 = vmax.f32 %v533, 1e-06
        %v568 = vmax.f32 %v536, 1e-06
        %v569 = vmax.f32 %v539, 1e-06
        %v570 = vmax.f32 %v542, 1e-06
        %v571 = vmax.f32 %v545, 1e-06
        %v572 = vmax.f32 %v548, 1e-06
        %v573 = vmax.f32 %v551, 1e-06
        %v574 = vmax.f32 %v554, 1e-06
        %v575 = vmax.f32 %v557, 1e-06
        %v576 = vmax.f32 %v560, 1e-06
        %v577 = vmul.f32 %v561, 0.002232143
        %v578 = vmul.f32 %v562, 0.002232143
        %v579 = vmul.f32 %v563, 0.002232143
        %v580 = vmul.f32 %v564, 0.002232143
        %v581 = vmul.f32 %v565, 0.002232143
        %v582 = vmul.f32 %v566, 0.002232143
        %v583 = vmul.f32 %v567, 0.002232143
        %v584 = vmul.f32 %v568, 0.002232143
        %v585 = vmul.f32 %v569, 0.002232143
        %v586 = vmul.f32 %v570, 0.002232143
        %v587 = vmul.f32 %v571, 0.002232143
        %v588 = vmul.f32 %v572, 0.002232143
        %v589 = vmul.f32 %v573, 0.002232143
        %v590 = vmul.f32 %v574, 0.002232143
        %v591 = vmul.f32 %v575, 0.002232143
        %v592 = vmul.f32 %v576, 0.002232143
        %v593 = vpack.c.bf16 %v578, %v577
        %v594 = vpack.c.bf16 %v580, %v579
        %v595 = vpack.c.bf16 %v582, %v581
        %v596 = vpack.c.bf16 %v584, %v583
        %v597 = vpack.c.bf16 %v586, %v585
        %v598 = vpack.c.bf16 %v588, %v587
        %v599 = vpack.c.bf16 %v590, %v589
        %v600 = vpack.c.bf16 %v592, %v591
        %v610 = vunpack.c.l.s4 839922192
        %v611 = vunpack.c.0.s8 %v610
        %v612 = vlaneseq
        %v613 = vshrl.u32 %v612, 7
        %v614 = vsub.s32 %v611, %v613
        %v615 = vrot.slane %v593, %v614
        %v617 = vunpack.c.l.s4 1985246804
        %v618 = vunpack.c.0.s8 %v617
        %v619 = vlaneseq
        %v620 = vshrl.u32 %v619, 7
        %v621 = vsub.s32 %v618, %v620
        %v622 = vrot.slane %v593, %v621
        %v624 = vunpack.c.l.s4 839922192
        %v625 = vunpack.c.0.s8 %v624
        %v626 = vlaneseq
        %v627 = vshrl.u32 %v626, 7
        %v628 = vsub.s32 %v625, %v627
        %v629 = vrot.slane %v594, %v628
        %v631 = vunpack.c.l.s4 1985246804
        %v632 = vunpack.c.0.s8 %v631
        %v633 = vlaneseq
        %v634 = vshrl.u32 %v633, 7
        %v635 = vsub.s32 %v632, %v634
        %v636 = vrot.slane %v594, %v635
        %v638 = vunpack.c.l.s4 839922192
        %v639 = vunpack.c.0.s8 %v638
        %v640 = vlaneseq
        %v641 = vshrl.u32 %v640, 7
        %v642 = vsub.s32 %v639, %v641
        %v643 = vrot.slane %v595, %v642
        %v645 = vunpack.c.l.s4 1985246804
        %v646 = vunpack.c.0.s8 %v645
        %v647 = vlaneseq
        %v648 = vshrl.u32 %v647, 7
        %v649 = vsub.s32 %v646, %v648
        %v650 = vrot.slane %v595, %v649
        %v652 = vunpack.c.l.s4 839922192
        %v653 = vunpack.c.0.s8 %v652
        %v654 = vlaneseq
        %v655 = vshrl.u32 %v654, 7
        %v656 = vsub.s32 %v653, %v655
        %v657 = vrot.slane %v596, %v656
        %v659 = vunpack.c.l.s4 1985246804
        %v660 = vunpack.c.0.s8 %v659
        %v661 = vlaneseq
        %v662 = vshrl.u32 %v661, 7
        %v663 = vsub.s32 %v660, %v662
        %v664 = vrot.slane %v596, %v663
        %v666 = vunpack.c.l.s4 839922192
        %v667 = vunpack.c.0.s8 %v666
        %v668 = vlaneseq
        %v669 = vshrl.u32 %v668, 7
        %v670 = vsub.s32 %v667, %v669
        %v671 = vrot.slane %v597, %v670
        %v673 = vunpack.c.l.s4 1985246804
        %v674 = vunpack.c.0.s8 %v673
        %v675 = vlaneseq
        %v676 = vshrl.u32 %v675, 7
        %v677 = vsub.s32 %v674, %v676
        %v678 = vrot.slane %v597, %v677
        %v680 = vunpack.c.l.s4 839922192
        %v681 = vunpack.c.0.s8 %v680
        %v682 = vlaneseq
        %v683 = vshrl.u32 %v682, 7
        %v684 = vsub.s32 %v681, %v683
        %v685 = vrot.slane %v598, %v684
        %v687 = vunpack.c.l.s4 1985246804
        %v688 = vunpack.c.0.s8 %v687
        %v689 = vlaneseq
        %v690 = vshrl.u32 %v689, 7
        %v691 = vsub.s32 %v688, %v690
        %v692 = vrot.slane %v598, %v691
        %v694 = vunpack.c.l.s4 839922192
        %v695 = vunpack.c.0.s8 %v694
        %v696 = vlaneseq
        %v697 = vshrl.u32 %v696, 7
        %v698 = vsub.s32 %v695, %v697
        %v699 = vrot.slane %v599, %v698
        %v701 = vunpack.c.l.s4 1985246804
        %v702 = vunpack.c.0.s8 %v701
        %v703 = vlaneseq
        %v704 = vshrl.u32 %v703, 7
        %v705 = vsub.s32 %v702, %v704
        %v706 = vrot.slane %v599, %v705
        %v708 = vunpack.c.l.s4 839922192
        %v709 = vunpack.c.0.s8 %v708
        %v710 = vlaneseq
        %v711 = vshrl.u32 %v710, 7
        %v712 = vsub.s32 %v709, %v711
        %v713 = vrot.slane %v600, %v712
        %v715 = vunpack.c.l.s4 1985246804
        %v716 = vunpack.c.0.s8 %v715
        %v717 = vlaneseq
        %v718 = vshrl.u32 %v717, 7
        %v719 = vsub.s32 %v716, %v718
        %v720 = vrot.slane %v600, %v719
        %vm737 = vcmask 3072
        %738 = vst.msk [vmem:[%s217] sm:$0xf] %vm737, %v615
        %739 = vst.msk [vmem:[%s217 + $0x4] sm:$0xf] %vm737, %v622
        %740 = vst.msk [vmem:[%s217 + $0x8] sm:$0xf] %vm737, %v629
        %741 = vst.msk [vmem:[%s217 + $0xc] sm:$0xf] %vm737, %v636
        %742 = vst.msk [vmem:[%s217 + $0x10] sm:$0xf] %vm737, %v643
        %743 = vst.msk [vmem:[%s217 + $0x14] sm:$0xf] %vm737, %v650
        %744 = vst.msk [vmem:[%s217 + $0x18] sm:$0xf] %vm737, %v657
        %745 = vst.msk [vmem:[%s217 + $0x1c] sm:$0xf] %vm737, %v664
        %746 = vst.msk [vmem:[%s217 + $0x20] sm:$0xf] %vm737, %v671
        %747 = vst.msk [vmem:[%s217 + $0x24] sm:$0xf] %vm737, %v678
        %748 = vst.msk [vmem:[%s217 + $0x28] sm:$0xf] %vm737, %v685
        %749 = vst.msk [vmem:[%s217 + $0x2c] sm:$0xf] %vm737, %v692
        %750 = vst.msk [vmem:[%s217 + $0x30] sm:$0xf] %vm737, %v699
        %751 = vst.msk [vmem:[%s217 + $0x34] sm:$0xf] %vm737, %v706
        %752 = vst.msk [vmem:[%s217 + $0x38] sm:$0xf] %vm737, %v713
        %753 = vst.msk [vmem:[%s217 + $0x3c] sm:$0xf] %vm737, %v720
        %v754 = vrcp.pop %v561
        %v755 = vmul.f32 448.0, %v754
        %v756 = vrcp.pop %v562
        %v757 = vmul.f32 448.0, %v756
        %v758 = vrcp.pop %v563
        %v759 = vmul.f32 448.0, %v758
        %v760 = vrcp.pop %v564
        %v761 = vmul.f32 448.0, %v760
        %v762 = vrcp.pop %v565
        %v763 = vmul.f32 448.0, %v762
        %v764 = vrcp.pop %v566
        %v765 = vmul.f32 448.0, %v764
        %v766 = vrcp.pop %v567
        %v767 = vmul.f32 448.0, %v766
        %v768 = vrcp.pop %v568
        %v769 = vmul.f32 448.0, %v768
        %v770 = vrcp.pop %v569
        %v771 = vmul.f32 448.0, %v770
        %v772 = vrcp.pop %v570
        %v773 = vmul.f32 448.0, %v772
        %v774 = vrcp.pop %v571
        %v775 = vmul.f32 448.0, %v774
        %v776 = vrcp.pop %v572
        %v777 = vmul.f32 448.0, %v776
        %v778 = vrcp.pop %v573
        %v779 = vmul.f32 448.0, %v778
        %v780 = vrcp.pop %v574
        %v781 = vmul.f32 448.0, %v780
        %v782 = vrcp.pop %v575
        %v783 = vmul.f32 448.0, %v782
        %v784 = vrcp.pop %v576
        %v785 = vmul.f32 448.0, %v784
        %v786 = vmul.f32 %v449, %v755
        %v787 = vmul.f32 %v450, %v755
        %v788 = vmul.f32 %v451, %v757
        %v789 = vmul.f32 %v452, %v757
        %v790 = vmul.f32 %v453, %v759
        %v791 = vmul.f32 %v454, %v759
        %v792 = vmul.f32 %v455, %v761
        %v793 = vmul.f32 %v456, %v761
        %v794 = vmul.f32 %v457, %v763
        %v795 = vmul.f32 %v458, %v763
        %v796 = vmul.f32 %v459, %v765
        %v797 = vmul.f32 %v460, %v765
        %v798 = vmul.f32 %v461, %v767
        %v799 = vmul.f32 %v462, %v767
        %v800 = vmul.f32 %v463, %v769
        %v801 = vmul.f32 %v464, %v769
        %v802 = vmul.f32 %v465, %v771
        %v803 = vmul.f32 %v466, %v771
        %v804 = vmul.f32 %v467, %v773
        %v805 = vmul.f32 %v468, %v773
        %v806 = vmul.f32 %v469, %v775
        %v807 = vmul.f32 %v470, %v775
        %v808 = vmul.f32 %v471, %v777
        %v809 = vmul.f32 %v472, %v777
        %v810 = vmul.f32 %v473, %v779
        %v811 = vmul.f32 %v474, %v779
        %v812 = vmul.f32 %v475, %v781
        %v813 = vmul.f32 %v476, %v781
        %v814 = vmul.f32 %v477, %v783
        %v815 = vmul.f32 %v478, %v783
        %v816 = vmul.f32 %v479, %v785
        %v817 = vmul.f32 %v480, %v785
        %v818 = vmax.f32 %v786, -448.0
        %v819 = vmax.f32 %v787, -448.0
        %v820 = vmax.f32 %v788, -448.0
        %v821 = vmax.f32 %v789, -448.0
        %v822 = vmax.f32 %v790, -448.0
        %v823 = vmax.f32 %v791, -448.0
        %v824 = vmax.f32 %v792, -448.0
        %v825 = vmax.f32 %v793, -448.0
        %v826 = vmax.f32 %v794, -448.0
        %v827 = vmax.f32 %v795, -448.0
        %v828 = vmax.f32 %v796, -448.0
        %v829 = vmax.f32 %v797, -448.0
        %v830 = vmax.f32 %v798, -448.0
        %v831 = vmax.f32 %v799, -448.0
        %v832 = vmax.f32 %v800, -448.0
        %v833 = vmax.f32 %v801, -448.0
        %v834 = vmax.f32 %v802, -448.0
        %v835 = vmax.f32 %v803, -448.0
        %v836 = vmax.f32 %v804, -448.0
        %v837 = vmax.f32 %v805, -448.0
        %v838 = vmax.f32 %v806, -448.0
        %v839 = vmax.f32 %v807, -448.0
        %v840 = vmax.f32 %v808, -448.0
        %v841 = vmax.f32 %v809, -448.0
        %v842 = vmax.f32 %v810, -448.0
        %v843 = vmax.f32 %v811, -448.0
        %v844 = vmax.f32 %v812, -448.0
        %v845 = vmax.f32 %v813, -448.0
        %v846 = vmax.f32 %v814, -448.0
        %v847 = vmax.f32 %v815, -448.0
        %v848 = vmax.f32 %v816, -448.0
        %v849 = vmax.f32 %v817, -448.0
        %v850 = vmin.f32 %v818, 448.0
        %v851 = vmin.f32 %v819, 448.0
        %v852 = vmin.f32 %v820, 448.0
        %v853 = vmin.f32 %v821, 448.0
        %v854 = vmin.f32 %v822, 448.0
        %v855 = vmin.f32 %v823, 448.0
        %v856 = vmin.f32 %v824, 448.0
        %v857 = vmin.f32 %v825, 448.0
        %v858 = vmin.f32 %v826, 448.0
        %v859 = vmin.f32 %v827, 448.0
        %v860 = vmin.f32 %v828, 448.0
        %v861 = vmin.f32 %v829, 448.0
        %v862 = vmin.f32 %v830, 448.0
        %v863 = vmin.f32 %v831, 448.0
        %v864 = vmin.f32 %v832, 448.0
        %v865 = vmin.f32 %v833, 448.0
        %v866 = vmin.f32 %v834, 448.0
        %v867 = vmin.f32 %v835, 448.0
        %v868 = vmin.f32 %v836, 448.0
        %v869 = vmin.f32 %v837, 448.0
        %v870 = vmin.f32 %v838, 448.0
        %v871 = vmin.f32 %v839, 448.0
        %v872 = vmin.f32 %v840, 448.0
        %v873 = vmin.f32 %v841, 448.0
        %v874 = vmin.f32 %v842, 448.0
        %v875 = vmin.f32 %v843, 448.0
        %v876 = vmin.f32 %v844, 448.0
        %v877 = vmin.f32 %v845, 448.0
        %v878 = vmin.f32 %v846, 448.0
        %v879 = vmin.f32 %v847, 448.0
        %v880 = vmin.f32 %v848, 448.0
        %v881 = vmin.f32 %v849, 448.0
        %v882 = vand.u32 2147483647, %v850
        %v883 = vand.u32 %v850, 2147483648
        %v885 = vadd.f32 1182793728, %v882
        %v887 = vsub.s32 %v885, 1182793728
        %v888 = vshrl.u32 %v850, 20
        %v889 = vand.u32 %v888, 1
        %v890 = vadd.s32 %v882, 3288858623
        %v891 = vadd.s32 %v890, %v889
        %v892 = vshrl.u32 %v891, 20
        %vm893 = vcmp.lt.s32.totalorder %v882, 1015021568
        %v894 = vsel %vm893, %v887, %v892
        %vm895 = vcmp.ge.s32.totalorder %v882, 1139277825
        %v896 = vsel %vm895, 127, %v894
        %vm897 = vcmp.ne.f32.partialorder %v850, %v850
        %v898 = vsel %vm897, 127, %v896
        %v899 = vshrl.u32 %v883, 24
        %v900 = vor.u32 %v898, %v899
        %v901 = vor.u32 %v900, 4294967040
        %v903 = vand.u32 2147483647, %v852
        %v904 = vand.u32 %v852, 2147483648
        %v906 = vadd.f32 1182793728, %v903
        %v908 = vsub.s32 %v906, 1182793728
        %v909 = vshrl.u32 %v852, 20
        %v910 = vand.u32 %v909, 1
        %v911 = vadd.s32 %v903, 3288858623
        %v912 = vadd.s32 %v911, %v910
        %v913 = vshrl.u32 %v912, 20
        %vm914 = vcmp.lt.s32.totalorder %v903, 1015021568
        %v915 = vsel %vm914, %v908, %v913
        %vm916 = vcmp.ge.s32.totalorder %v903, 1139277825
        %v917 = vsel %vm916, 127, %v915
        %vm918 = vcmp.ne.f32.partialorder %v852, %v852
        %v919 = vsel %vm918, 127, %v917
        %v920 = vshrl.u32 %v904, 24
        %v921 = vor.u32 %v919, %v920
        %v922 = vor.u32 %v921, 4294967040
        %v924 = vand.u32 2147483647, %v854
        %v925 = vand.u32 %v854, 2147483648
        %v927 = vadd.f32 1182793728, %v924
        %v929 = vsub.s32 %v927, 1182793728
        %v930 = vshrl.u32 %v854, 20
        %v931 = vand.u32 %v930, 1
        %v932 = vadd.s32 %v924, 3288858623
        %v933 = vadd.s32 %v932, %v931
        %v934 = vshrl.u32 %v933, 20
        %vm935 = vcmp.lt.s32.totalorder %v924, 1015021568
        %v936 = vsel %vm935, %v929, %v934
        %vm937 = vcmp.ge.s32.totalorder %v924, 1139277825
        %v938 = vsel %vm937, 127, %v936
        %vm939 = vcmp.ne.f32.partialorder %v854, %v854
        %v940 = vsel %vm939, 127, %v938
        %v941 = vshrl.u32 %v925, 24
        %v942 = vor.u32 %v940, %v941
        %v943 = vor.u32 %v942, 4294967040
        %v945 = vand.u32 2147483647, %v856
        %v946 = vand.u32 %v856, 2147483648
        %v948 = vadd.f32 1182793728, %v945
        %v950 = vsub.s32 %v948, 1182793728
        %v951 = vshrl.u32 %v856, 20
        %v952 = vand.u32 %v951, 1
        %v953 = vadd.s32 %v945, 3288858623
        %v954 = vadd.s32 %v953, %v952
        %v955 = vshrl.u32 %v954, 20
        %vm956 = vcmp.lt.s32.totalorder %v945, 1015021568
        %v957 = vsel %vm956, %v950, %v955
        %vm958 = vcmp.ge.s32.totalorder %v945, 1139277825
        %v959 = vsel %vm958, 127, %v957
        %vm960 = vcmp.ne.f32.partialorder %v856, %v856
        %v961 = vsel %vm960, 127, %v959
        %v962 = vshrl.u32 %v946, 24
        %v963 = vor.u32 %v961, %v962
        %v964 = vor.u32 %v963, 4294967040
        %v966 = vpack.c.b16 %v922, %v901
        %v967 = vpack.c.b16 %v964, %v943
        %v968 = vpack.c.b8 %v967, %v966
        %v970 = vand.u32 2147483647, %v851
        %v971 = vand.u32 %v851, 2147483648
        %v973 = vadd.f32 1182793728, %v970
        %v975 = vsub.s32 %v973, 1182793728
        %v976 = vshrl.u32 %v851, 20
        %v977 = vand.u32 %v976, 1
        %v978 = vadd.s32 %v970, 3288858623
        %v979 = vadd.s32 %v978, %v977
        %v980 = vshrl.u32 %v979, 20
        %vm981 = vcmp.lt.s32.totalorder %v970, 1015021568
        %v982 = vsel %vm981, %v975, %v980
        %vm983 = vcmp.ge.s32.totalorder %v970, 1139277825
        %v984 = vsel %vm983, 127, %v982
        %vm985 = vcmp.ne.f32.partialorder %v851, %v851
        %v986 = vsel %vm985, 127, %v984
        %v987 = vshrl.u32 %v971, 24
        %v988 = vor.u32 %v986, %v987
        %v989 = vor.u32 %v988, 4294967040
        %v991 = vand.u32 2147483647, %v853
        %v992 = vand.u32 %v853, 2147483648
        %v994 = vadd.f32 1182793728, %v991
        %v996 = vsub.s32 %v994, 1182793728
        %v997 = vshrl.u32 %v853, 20
        %v998 = vand.u32 %v997, 1
        %v999 = vadd.s32 %v991, 3288858623
        %v1000 = vadd.s32 %v999, %v998
        %v1001 = vshrl.u32 %v1000, 20
        %vm1002 = vcmp.lt.s32.totalorder %v991, 1015021568
        %v1003 = vsel %vm1002, %v996, %v1001
        %vm1004 = vcmp.ge.s32.totalorder %v991, 1139277825
        %v1005 = vsel %vm1004, 127, %v1003
        %vm1006 = vcmp.ne.f32.partialorder %v853, %v853
        %v1007 = vsel %vm1006, 127, %v1005
        %v1008 = vshrl.u32 %v992, 24
        %v1009 = vor.u32 %v1007, %v1008
        %v1010 = vor.u32 %v1009, 4294967040
        %v1012 = vand.u32 2147483647, %v855
        %v1013 = vand.u32 %v855, 2147483648
        %v1015 = vadd.f32 1182793728, %v1012
        %v1017 = vsub.s32 %v1015, 1182793728
        %v1018 = vshrl.u32 %v855, 20
        %v1019 = vand.u32 %v1018, 1
        %v1020 = vadd.s32 %v1012, 3288858623
        %v1021 = vadd.s32 %v1020, %v1019
        %v1022 = vshrl.u32 %v1021, 20
        %vm1023 = vcmp.lt.s32.totalorder %v1012, 1015021568
        %v1024 = vsel %vm1023, %v1017, %v1022
        %vm1025 = vcmp.ge.s32.totalorder %v1012, 1139277825
        %v1026 = vsel %vm1025, 127, %v1024
        %vm1027 = vcmp.ne.f32.partialorder %v855, %v855
        %v1028 = vsel %vm1027, 127, %v1026
        %v1029 = vshrl.u32 %v1013, 24
        %v1030 = vor.u32 %v1028, %v1029
        %v1031 = vor.u32 %v1030, 4294967040
        %v1033 = vand.u32 2147483647, %v857
        %v1034 = vand.u32 %v857, 2147483648
        %v1036 = vadd.f32 1182793728, %v1033
        %v1038 = vsub.s32 %v1036, 1182793728
        %v1039 = vshrl.u32 %v857, 20
        %v1040 = vand.u32 %v1039, 1
        %v1041 = vadd.s32 %v1033, 3288858623
        %v1042 = vadd.s32 %v1041, %v1040
        %v1043 = vshrl.u32 %v1042, 20
        %vm1044 = vcmp.lt.s32.totalorder %v1033, 1015021568
        %v1045 = vsel %vm1044, %v1038, %v1043
        %vm1046 = vcmp.ge.s32.totalorder %v1033, 1139277825
        %v1047 = vsel %vm1046, 127, %v1045
        %vm1048 = vcmp.ne.f32.partialorder %v857, %v857
        %v1049 = vsel %vm1048, 127, %v1047
        %v1050 = vshrl.u32 %v1034, 24
        %v1051 = vor.u32 %v1049, %v1050
        %v1052 = vor.u32 %v1051, 4294967040
        %v1054 = vpack.c.b16 %v1010, %v989
        %v1055 = vpack.c.b16 %v1052, %v1031
        %v1056 = vpack.c.b8 %v1055, %v1054
        %v1058 = vand.u32 2147483647, %v858
        %v1059 = vand.u32 %v858, 2147483648
        %v1061 = vadd.f32 1182793728, %v1058
        %v1063 = vsub.s32 %v1061, 1182793728
        %v1064 = vshrl.u32 %v858, 20
        %v1065 = vand.u32 %v1064, 1
        %v1066 = vadd.s32 %v1058, 3288858623
        %v1067 = vadd.s32 %v1066, %v1065
        %v1068 = vshrl.u32 %v1067, 20
        %vm1069 = vcmp.lt.s32.totalorder %v1058, 1015021568
        %v1070 = vsel %vm1069, %v1063, %v1068
        %vm1071 = vcmp.ge.s32.totalorder %v1058, 1139277825
        %v1072 = vsel %vm1071, 127, %v1070
        %vm1073 = vcmp.ne.f32.partialorder %v858, %v858
        %v1074 = vsel %vm1073, 127, %v1072
        %v1075 = vshrl.u32 %v1059, 24
        %v1076 = vor.u32 %v1074, %v1075
        %v1077 = vor.u32 %v1076, 4294967040
        %v1079 = vand.u32 2147483647, %v860
        %v1080 = vand.u32 %v860, 2147483648
        %v1082 = vadd.f32 1182793728, %v1079
        %v1084 = vsub.s32 %v1082, 1182793728
        %v1085 = vshrl.u32 %v860, 20
        %v1086 = vand.u32 %v1085, 1
        %v1087 = vadd.s32 %v1079, 3288858623
        %v1088 = vadd.s32 %v1087, %v1086
        %v1089 = vshrl.u32 %v1088, 20
        %vm1090 = vcmp.lt.s32.totalorder %v1079, 1015021568
        %v1091 = vsel %vm1090, %v1084, %v1089
        %vm1092 = vcmp.ge.s32.totalorder %v1079, 1139277825
        %v1093 = vsel %vm1092, 127, %v1091
        %vm1094 = vcmp.ne.f32.partialorder %v860, %v860
        %v1095 = vsel %vm1094, 127, %v1093
        %v1096 = vshrl.u32 %v1080, 24
        %v1097 = vor.u32 %v1095, %v1096
        %v1098 = vor.u32 %v1097, 4294967040
        %v1100 = vand.u32 2147483647, %v862
        %v1101 = vand.u32 %v862, 2147483648
        %v1103 = vadd.f32 1182793728, %v1100
        %v1105 = vsub.s32 %v1103, 1182793728
        %v1106 = vshrl.u32 %v862, 20
        %v1107 = vand.u32 %v1106, 1
        %v1108 = vadd.s32 %v1100, 3288858623
        %v1109 = vadd.s32 %v1108, %v1107
        %v1110 = vshrl.u32 %v1109, 20
        %vm1111 = vcmp.lt.s32.totalorder %v1100, 1015021568
        %v1112 = vsel %vm1111, %v1105, %v1110
        %vm1113 = vcmp.ge.s32.totalorder %v1100, 1139277825
        %v1114 = vsel %vm1113, 127, %v1112
        %vm1115 = vcmp.ne.f32.partialorder %v862, %v862
        %v1116 = vsel %vm1115, 127, %v1114
        %v1117 = vshrl.u32 %v1101, 24
        %v1118 = vor.u32 %v1116, %v1117
        %v1119 = vor.u32 %v1118, 4294967040
        %v1121 = vand.u32 2147483647, %v864
        %v1122 = vand.u32 %v864, 2147483648
        %v1124 = vadd.f32 1182793728, %v1121
        %v1126 = vsub.s32 %v1124, 1182793728
        %v1127 = vshrl.u32 %v864, 20
        %v1128 = vand.u32 %v1127, 1
        %v1129 = vadd.s32 %v1121, 3288858623
        %v1130 = vadd.s32 %v1129, %v1128
        %v1131 = vshrl.u32 %v1130, 20
        %vm1132 = vcmp.lt.s32.totalorder %v1121, 1015021568
        %v1133 = vsel %vm1132, %v1126, %v1131
        %vm1134 = vcmp.ge.s32.totalorder %v1121, 1139277825
        %v1135 = vsel %vm1134, 127, %v1133
        %vm1136 = vcmp.ne.f32.partialorder %v864, %v864
        %v1137 = vsel %vm1136, 127, %v1135
        %v1138 = vshrl.u32 %v1122, 24
        %v1139 = vor.u32 %v1137, %v1138
        %v1140 = vor.u32 %v1139, 4294967040
        %v1142 = vpack.c.b16 %v1098, %v1077
        %v1143 = vpack.c.b16 %v1140, %v1119
        %v1144 = vpack.c.b8 %v1143, %v1142
        %v1146 = vand.u32 2147483647, %v859
        %v1147 = vand.u32 %v859, 2147483648
        %v1149 = vadd.f32 1182793728, %v1146
        %v1151 = vsub.s32 %v1149, 1182793728
        %v1152 = vshrl.u32 %v859, 20
        %v1153 = vand.u32 %v1152, 1
        %v1154 = vadd.s32 %v1146, 3288858623
        %v1155 = vadd.s32 %v1154, %v1153
        %v1156 = vshrl.u32 %v1155, 20
        %vm1157 = vcmp.lt.s32.totalorder %v1146, 1015021568
        %v1158 = vsel %vm1157, %v1151, %v1156
        %vm1159 = vcmp.ge.s32.totalorder %v1146, 1139277825
        %v1160 = vsel %vm1159, 127, %v1158
        %vm1161 = vcmp.ne.f32.partialorder %v859, %v859
        %v1162 = vsel %vm1161, 127, %v1160
        %v1163 = vshrl.u32 %v1147, 24
        %v1164 = vor.u32 %v1162, %v1163
        %v1165 = vor.u32 %v1164, 4294967040
        %v1167 = vand.u32 2147483647, %v861
        %v1168 = vand.u32 %v861, 2147483648
        %v1170 = vadd.f32 1182793728, %v1167
        %v1172 = vsub.s32 %v1170, 1182793728
        %v1173 = vshrl.u32 %v861, 20
        %v1174 = vand.u32 %v1173, 1
        %v1175 = vadd.s32 %v1167, 3288858623
        %v1176 = vadd.s32 %v1175, %v1174
        %v1177 = vshrl.u32 %v1176, 20
        %vm1178 = vcmp.lt.s32.totalorder %v1167, 1015021568
        %v1179 = vsel %vm1178, %v1172, %v1177
        %vm1180 = vcmp.ge.s32.totalorder %v1167, 1139277825
        %v1181 = vsel %vm1180, 127, %v1179
        %vm1182 = vcmp.ne.f32.partialorder %v861, %v861
        %v1183 = vsel %vm1182, 127, %v1181
        %v1184 = vshrl.u32 %v1168, 24
        %v1185 = vor.u32 %v1183, %v1184
        %v1186 = vor.u32 %v1185, 4294967040
        %v1188 = vand.u32 2147483647, %v863
        %v1189 = vand.u32 %v863, 2147483648
        %v1191 = vadd.f32 1182793728, %v1188
        %v1193 = vsub.s32 %v1191, 1182793728
        %v1194 = vshrl.u32 %v863, 20
        %v1195 = vand.u32 %v1194, 1
        %v1196 = vadd.s32 %v1188, 3288858623
        %v1197 = vadd.s32 %v1196, %v1195
        %v1198 = vshrl.u32 %v1197, 20
        %vm1199 = vcmp.lt.s32.totalorder %v1188, 1015021568
        %v1200 = vsel %vm1199, %v1193, %v1198
        %vm1201 = vcmp.ge.s32.totalorder %v1188, 1139277825
        %v1202 = vsel %vm1201, 127, %v1200
        %vm1203 = vcmp.ne.f32.partialorder %v863, %v863
        %v1204 = vsel %vm1203, 127, %v1202
        %v1205 = vshrl.u32 %v1189, 24
        %v1206 = vor.u32 %v1204, %v1205
        %v1207 = vor.u32 %v1206, 4294967040
        %v1209 = vand.u32 2147483647, %v865
        %v1210 = vand.u32 %v865, 2147483648
        %v1212 = vadd.f32 1182793728, %v1209
        %v1214 = vsub.s32 %v1212, 1182793728
        %v1215 = vshrl.u32 %v865, 20
        %v1216 = vand.u32 %v1215, 1
        %v1217 = vadd.s32 %v1209, 3288858623
        %v1218 = vadd.s32 %v1217, %v1216
        %v1219 = vshrl.u32 %v1218, 20
        %vm1220 = vcmp.lt.s32.totalorder %v1209, 1015021568
        %v1221 = vsel %vm1220, %v1214, %v1219
        %vm1222 = vcmp.ge.s32.totalorder %v1209, 1139277825
        %v1223 = vsel %vm1222, 127, %v1221
        %vm1224 = vcmp.ne.f32.partialorder %v865, %v865
        %v1225 = vsel %vm1224, 127, %v1223
        %v1226 = vshrl.u32 %v1210, 24
        %v1227 = vor.u32 %v1225, %v1226
        %v1228 = vor.u32 %v1227, 4294967040
        %v1230 = vpack.c.b16 %v1186, %v1165
        %v1231 = vpack.c.b16 %v1228, %v1207
        %v1232 = vpack.c.b8 %v1231, %v1230
        %v1234 = vand.u32 2147483647, %v866
        %v1235 = vand.u32 %v866, 2147483648
        %v1237 = vadd.f32 1182793728, %v1234
        %v1239 = vsub.s32 %v1237, 1182793728
        %v1240 = vshrl.u32 %v866, 20
        %v1241 = vand.u32 %v1240, 1
        %v1242 = vadd.s32 %v1234, 3288858623
        %v1243 = vadd.s32 %v1242, %v1241
        %v1244 = vshrl.u32 %v1243, 20
        %vm1245 = vcmp.lt.s32.totalorder %v1234, 1015021568
        %v1246 = vsel %vm1245, %v1239, %v1244
        %vm1247 = vcmp.ge.s32.totalorder %v1234, 1139277825
        %v1248 = vsel %vm1247, 127, %v1246
        %vm1249 = vcmp.ne.f32.partialorder %v866, %v866
        %v1250 = vsel %vm1249, 127, %v1248
        %v1251 = vshrl.u32 %v1235, 24
        %v1252 = vor.u32 %v1250, %v1251
        %v1253 = vor.u32 %v1252, 4294967040
        %v1255 = vand.u32 2147483647, %v868
        %v1256 = vand.u32 %v868, 2147483648
        %v1258 = vadd.f32 1182793728, %v1255
        %v1260 = vsub.s32 %v1258, 1182793728
        %v1261 = vshrl.u32 %v868, 20
        %v1262 = vand.u32 %v1261, 1
        %v1263 = vadd.s32 %v1255, 3288858623
        %v1264 = vadd.s32 %v1263, %v1262
        %v1265 = vshrl.u32 %v1264, 20
        %vm1266 = vcmp.lt.s32.totalorder %v1255, 1015021568
        %v1267 = vsel %vm1266, %v1260, %v1265
        %vm1268 = vcmp.ge.s32.totalorder %v1255, 1139277825
        %v1269 = vsel %vm1268, 127, %v1267
        %vm1270 = vcmp.ne.f32.partialorder %v868, %v868
        %v1271 = vsel %vm1270, 127, %v1269
        %v1272 = vshrl.u32 %v1256, 24
        %v1273 = vor.u32 %v1271, %v1272
        %v1274 = vor.u32 %v1273, 4294967040
        %v1276 = vand.u32 2147483647, %v870
        %v1277 = vand.u32 %v870, 2147483648
        %v1279 = vadd.f32 1182793728, %v1276
        %v1281 = vsub.s32 %v1279, 1182793728
        %v1282 = vshrl.u32 %v870, 20
        %v1283 = vand.u32 %v1282, 1
        %v1284 = vadd.s32 %v1276, 3288858623
        %v1285 = vadd.s32 %v1284, %v1283
        %v1286 = vshrl.u32 %v1285, 20
        %vm1287 = vcmp.lt.s32.totalorder %v1276, 1015021568
        %v1288 = vsel %vm1287, %v1281, %v1286
        %vm1289 = vcmp.ge.s32.totalorder %v1276, 1139277825
        %v1290 = vsel %vm1289, 127, %v1288
        %vm1291 = vcmp.ne.f32.partialorder %v870, %v870
        %v1292 = vsel %vm1291, 127, %v1290
        %v1293 = vshrl.u32 %v1277, 24
        %v1294 = vor.u32 %v1292, %v1293
        %v1295 = vor.u32 %v1294, 4294967040
        %v1297 = vand.u32 2147483647, %v872
        %v1298 = vand.u32 %v872, 2147483648
        %v1300 = vadd.f32 1182793728, %v1297
        %v1302 = vsub.s32 %v1300, 1182793728
        %v1303 = vshrl.u32 %v872, 20
        %v1304 = vand.u32 %v1303, 1
        %v1305 = vadd.s32 %v1297, 3288858623
        %v1306 = vadd.s32 %v1305, %v1304
        %v1307 = vshrl.u32 %v1306, 20
        %vm1308 = vcmp.lt.s32.totalorder %v1297, 1015021568
        %v1309 = vsel %vm1308, %v1302, %v1307
        %vm1310 = vcmp.ge.s32.totalorder %v1297, 1139277825
        %v1311 = vsel %vm1310, 127, %v1309
        %vm1312 = vcmp.ne.f32.partialorder %v872, %v872
        %v1313 = vsel %vm1312, 127, %v1311
        %v1314 = vshrl.u32 %v1298, 24
        %v1315 = vor.u32 %v1313, %v1314
        %v1316 = vor.u32 %v1315, 4294967040
        %v1318 = vpack.c.b16 %v1274, %v1253
        %v1319 = vpack.c.b16 %v1316, %v1295
        %v1320 = vpack.c.b8 %v1319, %v1318
        %v1322 = vand.u32 2147483647, %v867
        %v1323 = vand.u32 %v867, 2147483648
        %v1325 = vadd.f32 1182793728, %v1322
        %v1327 = vsub.s32 %v1325, 1182793728
        %v1328 = vshrl.u32 %v867, 20
        %v1329 = vand.u32 %v1328, 1
        %v1330 = vadd.s32 %v1322, 3288858623
        %v1331 = vadd.s32 %v1330, %v1329
        %v1332 = vshrl.u32 %v1331, 20
        %vm1333 = vcmp.lt.s32.totalorder %v1322, 1015021568
        %v1334 = vsel %vm1333, %v1327, %v1332
        %vm1335 = vcmp.ge.s32.totalorder %v1322, 1139277825
        %v1336 = vsel %vm1335, 127, %v1334
        %vm1337 = vcmp.ne.f32.partialorder %v867, %v867
        %v1338 = vsel %vm1337, 127, %v1336
        %v1339 = vshrl.u32 %v1323, 24
        %v1340 = vor.u32 %v1338, %v1339
        %v1341 = vor.u32 %v1340, 4294967040
        %v1343 = vand.u32 2147483647, %v869
        %v1344 = vand.u32 %v869, 2147483648
        %v1346 = vadd.f32 1182793728, %v1343
        %v1348 = vsub.s32 %v1346, 1182793728
        %v1349 = vshrl.u32 %v869, 20
        %v1350 = vand.u32 %v1349, 1
        %v1351 = vadd.s32 %v1343, 3288858623
        %v1352 = vadd.s32 %v1351, %v1350
        %v1353 = vshrl.u32 %v1352, 20
        %vm1354 = vcmp.lt.s32.totalorder %v1343, 1015021568
        %v1355 = vsel %vm1354, %v1348, %v1353
        %vm1356 = vcmp.ge.s32.totalorder %v1343, 1139277825
        %v1357 = vsel %vm1356, 127, %v1355
        %vm1358 = vcmp.ne.f32.partialorder %v869, %v869
        %v1359 = vsel %vm1358, 127, %v1357
        %v1360 = vshrl.u32 %v1344, 24
        %v1361 = vor.u32 %v1359, %v1360
        %v1362 = vor.u32 %v1361, 4294967040
        %v1364 = vand.u32 2147483647, %v871
        %v1365 = vand.u32 %v871, 2147483648
        %v1367 = vadd.f32 1182793728, %v1364
        %v1369 = vsub.s32 %v1367, 1182793728
        %v1370 = vshrl.u32 %v871, 20
        %v1371 = vand.u32 %v1370, 1
        %v1372 = vadd.s32 %v1364, 3288858623
        %v1373 = vadd.s32 %v1372, %v1371
        %v1374 = vshrl.u32 %v1373, 20
        %vm1375 = vcmp.lt.s32.totalorder %v1364, 1015021568
        %v1376 = vsel %vm1375, %v1369, %v1374
        %vm1377 = vcmp.ge.s32.totalorder %v1364, 1139277825
        %v1378 = vsel %vm1377, 127, %v1376
        %vm1379 = vcmp.ne.f32.partialorder %v871, %v871
        %v1380 = vsel %vm1379, 127, %v1378
        %v1381 = vshrl.u32 %v1365, 24
        %v1382 = vor.u32 %v1380, %v1381
        %v1383 = vor.u32 %v1382, 4294967040
        %v1385 = vand.u32 2147483647, %v873
        %v1386 = vand.u32 %v873, 2147483648
        %v1388 = vadd.f32 1182793728, %v1385
        %v1390 = vsub.s32 %v1388, 1182793728
        %v1391 = vshrl.u32 %v873, 20
        %v1392 = vand.u32 %v1391, 1
        %v1393 = vadd.s32 %v1385, 3288858623
        %v1394 = vadd.s32 %v1393, %v1392
        %v1395 = vshrl.u32 %v1394, 20
        %vm1396 = vcmp.lt.s32.totalorder %v1385, 1015021568
        %v1397 = vsel %vm1396, %v1390, %v1395
        %vm1398 = vcmp.ge.s32.totalorder %v1385, 1139277825
        %v1399 = vsel %vm1398, 127, %v1397
        %vm1400 = vcmp.ne.f32.partialorder %v873, %v873
        %v1401 = vsel %vm1400, 127, %v1399
        %v1402 = vshrl.u32 %v1386, 24
        %v1403 = vor.u32 %v1401, %v1402
        %v1404 = vor.u32 %v1403, 4294967040
        %v1406 = vpack.c.b16 %v1362, %v1341
        %v1407 = vpack.c.b16 %v1404, %v1383
        %v1408 = vpack.c.b8 %v1407, %v1406
        %v1410 = vand.u32 2147483647, %v874
        %v1411 = vand.u32 %v874, 2147483648
        %v1413 = vadd.f32 1182793728, %v1410
        %v1415 = vsub.s32 %v1413, 1182793728
        %v1416 = vshrl.u32 %v874, 20
        %v1417 = vand.u32 %v1416, 1
        %v1418 = vadd.s32 %v1410, 3288858623
        %v1419 = vadd.s32 %v1418, %v1417
        %v1420 = vshrl.u32 %v1419, 20
        %vm1421 = vcmp.lt.s32.totalorder %v1410, 1015021568
        %v1422 = vsel %vm1421, %v1415, %v1420
        %vm1423 = vcmp.ge.s32.totalorder %v1410, 1139277825
        %v1424 = vsel %vm1423, 127, %v1422
        %vm1425 = vcmp.ne.f32.partialorder %v874, %v874
        %v1426 = vsel %vm1425, 127, %v1424
        %v1427 = vshrl.u32 %v1411, 24
        %v1428 = vor.u32 %v1426, %v1427
        %v1429 = vor.u32 %v1428, 4294967040
        %v1431 = vand.u32 2147483647, %v876
        %v1432 = vand.u32 %v876, 2147483648
        %v1434 = vadd.f32 1182793728, %v1431
        %v1436 = vsub.s32 %v1434, 1182793728
        %v1437 = vshrl.u32 %v876, 20
        %v1438 = vand.u32 %v1437, 1
        %v1439 = vadd.s32 %v1431, 3288858623
        %v1440 = vadd.s32 %v1439, %v1438
        %v1441 = vshrl.u32 %v1440, 20
        %vm1442 = vcmp.lt.s32.totalorder %v1431, 1015021568
        %v1443 = vsel %vm1442, %v1436, %v1441
        %vm1444 = vcmp.ge.s32.totalorder %v1431, 1139277825
        %v1445 = vsel %vm1444, 127, %v1443
        %vm1446 = vcmp.ne.f32.partialorder %v876, %v876
        %v1447 = vsel %vm1446, 127, %v1445
        %v1448 = vshrl.u32 %v1432, 24
        %v1449 = vor.u32 %v1447, %v1448
        %v1450 = vor.u32 %v1449, 4294967040
        %v1452 = vand.u32 2147483647, %v878
        %v1453 = vand.u32 %v878, 2147483648
        %v1455 = vadd.f32 1182793728, %v1452
        %v1457 = vsub.s32 %v1455, 1182793728
        %v1458 = vshrl.u32 %v878, 20
        %v1459 = vand.u32 %v1458, 1
        %v1460 = vadd.s32 %v1452, 3288858623
        %v1461 = vadd.s32 %v1460, %v1459
        %v1462 = vshrl.u32 %v1461, 20
        %vm1463 = vcmp.lt.s32.totalorder %v1452, 1015021568
        %v1464 = vsel %vm1463, %v1457, %v1462
        %vm1465 = vcmp.ge.s32.totalorder %v1452, 1139277825
        %v1466 = vsel %vm1465, 127, %v1464
        %vm1467 = vcmp.ne.f32.partialorder %v878, %v878
        %v1468 = vsel %vm1467, 127, %v1466
        %v1469 = vshrl.u32 %v1453, 24
        %v1470 = vor.u32 %v1468, %v1469
        %v1471 = vor.u32 %v1470, 4294967040
        %v1473 = vand.u32 2147483647, %v880
        %v1474 = vand.u32 %v880, 2147483648
        %v1476 = vadd.f32 1182793728, %v1473
        %v1478 = vsub.s32 %v1476, 1182793728
        %v1479 = vshrl.u32 %v880, 20
        %v1480 = vand.u32 %v1479, 1
        %v1481 = vadd.s32 %v1473, 3288858623
        %v1482 = vadd.s32 %v1481, %v1480
        %v1483 = vshrl.u32 %v1482, 20
        %vm1484 = vcmp.lt.s32.totalorder %v1473, 1015021568
        %v1485 = vsel %vm1484, %v1478, %v1483
        %vm1486 = vcmp.ge.s32.totalorder %v1473, 1139277825
        %v1487 = vsel %vm1486, 127, %v1485
        %vm1488 = vcmp.ne.f32.partialorder %v880, %v880
        %v1489 = vsel %vm1488, 127, %v1487
        %v1490 = vshrl.u32 %v1474, 24
        %v1491 = vor.u32 %v1489, %v1490
        %v1492 = vor.u32 %v1491, 4294967040
        %v1494 = vpack.c.b16 %v1450, %v1429
        %v1495 = vpack.c.b16 %v1492, %v1471
        %v1496 = vpack.c.b8 %v1495, %v1494
        %v1498 = vand.u32 2147483647, %v875
        %v1499 = vand.u32 %v875, 2147483648
        %v1501 = vadd.f32 1182793728, %v1498
        %v1503 = vsub.s32 %v1501, 1182793728
        %v1504 = vshrl.u32 %v875, 20
        %v1505 = vand.u32 %v1504, 1
        %v1506 = vadd.s32 %v1498, 3288858623
        %v1507 = vadd.s32 %v1506, %v1505
        %v1508 = vshrl.u32 %v1507, 20
        %vm1509 = vcmp.lt.s32.totalorder %v1498, 1015021568
        %v1510 = vsel %vm1509, %v1503, %v1508
        %vm1511 = vcmp.ge.s32.totalorder %v1498, 1139277825
        %v1512 = vsel %vm1511, 127, %v1510
        %vm1513 = vcmp.ne.f32.partialorder %v875, %v875
        %v1514 = vsel %vm1513, 127, %v1512
        %v1515 = vshrl.u32 %v1499, 24
        %v1516 = vor.u32 %v1514, %v1515
        %v1517 = vor.u32 %v1516, 4294967040
        %v1519 = vand.u32 2147483647, %v877
        %v1520 = vand.u32 %v877, 2147483648
        %v1522 = vadd.f32 1182793728, %v1519
        %v1524 = vsub.s32 %v1522, 1182793728
        %v1525 = vshrl.u32 %v877, 20
        %v1526 = vand.u32 %v1525, 1
        %v1527 = vadd.s32 %v1519, 3288858623
        %v1528 = vadd.s32 %v1527, %v1526
        %v1529 = vshrl.u32 %v1528, 20
        %vm1530 = vcmp.lt.s32.totalorder %v1519, 1015021568
        %v1531 = vsel %vm1530, %v1524, %v1529
        %vm1532 = vcmp.ge.s32.totalorder %v1519, 1139277825
        %v1533 = vsel %vm1532, 127, %v1531
        %vm1534 = vcmp.ne.f32.partialorder %v877, %v877
        %v1535 = vsel %vm1534, 127, %v1533
        %v1536 = vshrl.u32 %v1520, 24
        %v1537 = vor.u32 %v1535, %v1536
        %v1538 = vor.u32 %v1537, 4294967040
        %v1540 = vand.u32 2147483647, %v879
        %v1541 = vand.u32 %v879, 2147483648
        %v1543 = vadd.f32 1182793728, %v1540
        %v1545 = vsub.s32 %v1543, 1182793728
        %v1546 = vshrl.u32 %v879, 20
        %v1547 = vand.u32 %v1546, 1
        %v1548 = vadd.s32 %v1540, 3288858623
        %v1549 = vadd.s32 %v1548, %v1547
        %v1550 = vshrl.u32 %v1549, 20
        %vm1551 = vcmp.lt.s32.totalorder %v1540, 1015021568
        %v1552 = vsel %vm1551, %v1545, %v1550
        %vm1553 = vcmp.ge.s32.totalorder %v1540, 1139277825
        %v1554 = vsel %vm1553, 127, %v1552
        %vm1555 = vcmp.ne.f32.partialorder %v879, %v879
        %v1556 = vsel %vm1555, 127, %v1554
        %v1557 = vshrl.u32 %v1541, 24
        %v1558 = vor.u32 %v1556, %v1557
        %v1559 = vor.u32 %v1558, 4294967040
        %v1561 = vand.u32 2147483647, %v881
        %v1562 = vand.u32 %v881, 2147483648
        %v1564 = vadd.f32 1182793728, %v1561
        %v1566 = vsub.s32 %v1564, 1182793728
        %v1567 = vshrl.u32 %v881, 20
        %v1568 = vand.u32 %v1567, 1
        %v1569 = vadd.s32 %v1561, 3288858623
        %v1570 = vadd.s32 %v1569, %v1568
        %v1571 = vshrl.u32 %v1570, 20
        %vm1572 = vcmp.lt.s32.totalorder %v1561, 1015021568
        %v1573 = vsel %vm1572, %v1566, %v1571
        %vm1574 = vcmp.ge.s32.totalorder %v1561, 1139277825
        %v1575 = vsel %vm1574, 127, %v1573
        %vm1576 = vcmp.ne.f32.partialorder %v881, %v881
        %v1577 = vsel %vm1576, 127, %v1575
        %v1578 = vshrl.u32 %v1562, 24
        %v1579 = vor.u32 %v1577, %v1578
        %v1580 = vor.u32 %v1579, 4294967040
        %v1582 = vpack.c.b16 %v1538, %v1517
        %v1583 = vpack.c.b16 %v1580, %v1559
        %v1584 = vpack.c.b8 %v1583, %v1582
        %1586 = vst [vmem:[%s203] sm:$0xff] %v968
        %1587 = vst [vmem:[%s203 + $0x8] sm:$0xff] %v1056
        %1588 = vst [vmem:[%s203 + $0x10] sm:$0xff] %v1144
        %1589 = vst [vmem:[%s203 + $0x18] sm:$0xff] %v1232
        %1590 = vst [vmem:[%s203 + $0x20] sm:$0xff] %v1320
        %1591 = vst [vmem:[%s203 + $0x28] sm:$0xff] %v1408
        %1592 = vst [vmem:[%s203 + $0x30] sm:$0xff] %v1496
        %1593 = vst [vmem:[%s203 + $0x38] sm:$0xff] %v1584
        %s1594 = sand.u32 %s77, 1
        %s1595 = scalar_lea.sflag [#allocation4], %s1594
        %s1596 = sand.u32 %s77, 1
        %s1597 = smul.addr %s1596, 64
        %s1598 = scalar_lea.vmem [#allocation7], %s1597
        %s1599 = smul.u32 16, %s22
        %p1600 = scmp.lt.s32.totalorder %s1599, 31
        %s1601 = scalar_select %p1600, %s1599, 31
        %s1602 = smul.addr %s1601, 4
        %s1603 = scalar_lea.vmem %s3, %s1602
        // Predicated region
        $region37: #{tpu_custom_call.1} parent=27 // pred_check
          %p1604 = pneg %p87
        $region38: #{tpu_custom_call.1} parent=27 // pred_check_branch
          %1606 = sbr.rel (%p1604) target = $region40
        $region39: #{tpu_custom_call.1} parent=27 // pred_region
          %s1607 = smul.u32 4, %s22
          %s1609 = ssub.s32 1024, 1024
          %1610 = vsyncadd %s1595, %s1609
          %s1611 = smul.addr %s1607, 2
          %s1612 = smul.addr %s1611, 128
          %s1613 = scalar_lea.hbm %s2, %s1612
          %s1614 = sshll.u32 %s1598, 4
          %s1615 = int_to_ptr.vmem [resolvable:$true] %s1614
          %1620 = dma.vmem_to_hbm [thread:$0]  %s1615, 1024, %s1613, %s1595, 256, 256, 16
        $region40: #{tpu_custom_call.1} parent=27 // pred_fallthru
          _
        // Predicated region
        $region41: #{tpu_custom_call.1} parent=27 // pred_check
          %p1621 = pneg %p113
        $region42: #{tpu_custom_call.1} parent=27 // pred_check_branch
          %1623 = sbr.rel (%p1621) target = $region44
        $region43: #{tpu_custom_call.1} parent=27 // pred_region
          %s1624 = smul.u32 16, %s22
        $region44: #{tpu_custom_call.1} parent=27 // pred_fallthru
          _
      $region28: #{tpu_custom_call.1} parent=5 // pred_fallthru
        _
      %p1625 = scmp.le.s32.totalorder 2, %s17
      // Predicated region
      $region45: #{tpu_custom_call.1} parent=5 // pred_check
        %p1626 = pneg %p1625
      $region46: #{tpu_custom_call.1} parent=5 // pred_check_branch
        %1628 = sbr.rel (%p1626) target = $region48
      $region47: #{tpu_custom_call.1} parent=5 // pred_region
        %s1629 = ssub.s32 %s17, 2
        // Predicated region
        $region49: #{tpu_custom_call.1} parent=47 // pred_check
          %p1630 = pneg %p93
        $region50: #{tpu_custom_call.1} parent=47 // pred_check_branch
          %1632 = sbr.rel (%p1630) target = $region52
        $region51: #{tpu_custom_call.1} parent=47 // pred_region
          %s1633 = sand.u32 %s78, 1
          %s1634 = scalar_lea.sflag [#allocation4], %s1633
          %s1635 = sand.u32 %s78, 1
          %s1636 = smul.addr %s1635, 64
          %s1637 = scalar_lea.vmem [#allocation7], %s1636
          %1638 = dma.done %s1634, 1024
        $region52: #{tpu_custom_call.1} parent=47 // pred_fallthru
          _
        // Predicated region
        $region53: #{tpu_custom_call.1} parent=47 // pred_check
          %p1639 = pneg %p119
        $region54: #{tpu_custom_call.1} parent=47 // pred_check_branch
          %1641 = sbr.rel (%p1639) target = $region56
        $region55: #{tpu_custom_call.1} parent=47 // pred_region
          %s1642 = smul.u32 16, %s23
          %p1643 = scmp.lt.s32.totalorder %s1642, 31
          %s1644 = scalar_select %p1643, %s1642, 31
          %s1645 = smul.addr %s1644, 4
          %s1646 = scalar_lea.vmem %s3, %s1645
        $region56: #{tpu_custom_call.1} parent=47 // pred_fallthru
          _
      $region48: #{tpu_custom_call.1} parent=5 // pred_fallthru
        _
    $region6: #{tpu_custom_call.1} parent=1 // loop_footer
      %s21 = sadd.s32 1, %s17
    $region7: #{tpu_custom_call.1} parent=1 // loop_footer_branch
      %16 = sbr.rel target = $region3
    $region8: #{tpu_custom_call.1} parent=1 // loop_exit
      _
    %1647 = vsyncpa [#allocation3], 1
    %s1648 = scalar_lea.sflag [#allocation3], 1
    %1649 = vsyncpa %s1648, 1
    %1650 = vsyncpa [#allocation6], 1
    %1651 = vsyncpa [#allocation4], 1
    %s1652 = scalar_lea.sflag [#allocation4], 1
    %1653 = vsyncpa %s1652, 1

</llo_original>
